<compile_context>
chip_gen: v5e
topology: v5e:2x2
jax: 0.10.0
libtpu: 0.0.40
codegen_flags: <defaults>
</compile_context>

<pallas_src>
import jax
import jax.numpy as jnp
from jax.experimental import pallas as pl
from jax.experimental.pallas import tpu as pltpu

IN_DIM = 784
IN_PAD = 896        # 7 * 128, lane-dense input feature dim
OUT_DIM = 10
OUT_PAD = 128       # lane-dense output dim; padded logits masked via -1e30 bias
NEG_BIG = -1e30     # representable in both f32 and bf16


# ---------------------------------------------------------------------------
# Fused kernel: (input Linear+ReLU) -> depth x (Linear+ReLU) -> Linear+log_softmax
# ---------------------------------------------------------------------------
def fused_mlp_kernel(*refs):
    """refs = (x_ref, w0, b0, w1, b1, ..., wL, bL, o_ref)."""
    x_ref, o_ref = refs[0], refs[-1]
    wb = refs[1:-1]
    n_layers = len(wb) // 2

    h = x_ref[...]                                       # (TB, IN_PAD) bf16

    # Input layer + hidden layers: y = x @ W + b ; relu ; cast back to bf16.
    for li in range(n_layers - 1):
        w = wb[2 * li][...]                              # (K, N)  bf16
        b = wb[2 * li + 1][...]                          # (1, N)  f32
        y = jnp.dot(h, w, preferred_element_type=jnp.float32) + b
        h = jnp.maximum(y, 0.0).astype(jnp.bfloat16)

    # Output layer + numerically-stable log_softmax.  Padded logit columns
    # carry a -1e30 bias so exp(z)=0 there and they drop out of the LSE.
    w = wb[-2][...]
    b = wb[-1][...]
    logits = jnp.dot(h, w, preferred_element_type=jnp.float32) + b
    m = jnp.max(logits, axis=-1, keepdims=True)
    z = logits - m
    lse = jnp.log(jnp.sum(jnp.exp(z), axis=-1, keepdims=True))
    o_ref[...] = (z - lse).astype(o_ref.dtype)


# ---------------------------------------------------------------------------
# Wrapper
# ---------------------------------------------------------------------------
def digit_classifier_forward(x, padded_params, *, batch_tile=128):
    """x: (B, 784) f32; padded_params: list of (W bf16 [K,N], b f32 [1,N])."""
    B = x.shape[0]

    # Lane-dense input: pad features 784 -> 896.
    x = jnp.pad(x, ((0, 0), (0, IN_PAD - x.shape[1])))
    # Pad batch to a multiple of the batch tile.
    B_pad = ((B + batch_tile - 1) // batch_tile) * batch_tile
    if B_pad != B:
        x = jnp.pad(x, ((0, B_pad - B), (0, 0)))
    x = x.astype(jnp.bfloat16)
    nb = B_pad // batch_tile

    in_specs = [pl.BlockSpec((batch_tile, IN_PAD), lambda i: (i, 0))]
    flat_args = [x]
    for w, b in padded_params:
        K, N = w.shape
        in_specs.append(pl.BlockSpec((K, N), lambda i: (0, 0)))   # resident weight
        in_specs.append(pl.BlockSpec((1, N), lambda i: (0, 0)))   # resident bias
        flat_args += [w, b]
    out_spec = pl.BlockSpec((batch_tile, OUT_PAD), lambda i: (i, 0))

    flops = 2 * B_pad * sum(w.shape[0] * w.shape[1] for w, _ in padded_params)
    bytes_accessed = (
        x.size * x.dtype.itemsize
        + sum(w.size * w.dtype.itemsize + b.size * b.dtype.itemsize
              for w, b in padded_params)
        + B_pad * OUT_PAD * 4)
    cost = pl.CostEstimate(flops=flops,
                           transcendentals=B_pad * (OUT_PAD + 1),
                           bytes_accessed=bytes_accessed)

    out = pl.pallas_call(
        fused_mlp_kernel,
        out_shape=jax.ShapeDtypeStruct((B_pad, OUT_PAD), jnp.float32),
        grid_spec=pltpu.PrefetchScalarGridSpec(
            num_scalar_prefetch=0,
            grid=(nb,),
            in_specs=in_specs,
            out_specs=out_spec),
        compiler_params=pltpu.CompilerParams(
            dimension_semantics=("parallel",),
            vmem_limit_bytes=32 * 1024 * 1024),
        cost_estimate=cost,
    )(*flat_args)

    return out[:B, :OUT_DIM]


# ---------------------------------------------------------------------------
# Parameters: PyTorch-style U(-1/sqrt(fan_in), 1/sqrt(fan_in)), stored [in, out]
# ---------------------------------------------------------------------------
def init_params(key, depth_lvl, node_lvl, in_dim=IN_DIM, out_dim=OUT_DIM):
    dims = [in_dim] + [node_lvl] * (depth_lvl + 1) + [out_dim]
    params = []
    for i in range(len(dims) - 1):
        fan_in, fan_out = dims[i], dims[i + 1]
        key, kw, kb = jax.random.split(key, 3)
        bound = 1.0 / float(fan_in) ** 0.5
        w = jax.random.uniform(kw, (fan_in, fan_out), jnp.float32, -bound, bound)
        b = jax.random.uniform(kb, (1, fan_out), jnp.float32, -bound, bound)
        params.append((w, b))
    return params


def pad_and_cast_params(params):
    """Lane-dense bf16 weights / f32 biases as consumed by the fused kernel."""
    padded = []
    n = len(params)
    for i, (w, b) in enumerate(params):
        if i == 0:                                   # input features 784 -> 896
            w = jnp.pad(w, ((0, IN_PAD - w.shape[0]), (0, 0)))
        if i == n - 1:                               # logits 10 -> 128, mask pad cols
            w = jnp.pad(w, ((0, 0), (0, OUT_PAD - w.shape[1])))
            b = jnp.pad(b, ((0, 0), (0, OUT_PAD - b.shape[1])),
                        constant_values=NEG_BIG)
        padded.append((w.astype(jnp.bfloat16), b.astype(jnp.float32)))
    return padded


# ---------------------------------------------------------------------------
# Pure-JAX reference mirroring the kernel math (bf16 weights/activations,
# f32 accumulation) for the correctness check.
# ---------------------------------------------------------------------------
def reference_forward(x, padded_params):
    h = jnp.pad(x, ((0, 0), (0, IN_PAD - x.shape[1]))).astype(jnp.bfloat16)
    for w, b in padded_params[:-1]:
        y = jnp.dot(h, w, preferred_element_type=jnp.float32) + b
        h = jnp.maximum(y, 0.0).astype(jnp.bfloat16)
    w, b = padded_params[-1]
    logits = jnp.dot(h, w, preferred_element_type=jnp.float32) + b
    return jax.nn.log_softmax(logits, axis=-1)[:, :OUT_DIM]


if __name__ == "__main__":
    key = jax.random.PRNGKey(0)
    kx, kp = jax.random.split(key)

    depth_lvl = 2      # hidden Linear(node, node) layers
    node_lvl = 128     # hidden width (fills v5e MXU; N-tiling not worth it on v6e/v7x)
    batch = 256        # >= 128 LHS rows per MXU matmul; 2 "parallel" grid steps

    x = jax.random.normal(kx, (batch, IN_DIM), jnp.float32)  # flattened 28x28 digits
    params = init_params(kp, depth_lvl, node_lvl)
    padded_params = pad_and_cast_params(params)

    out = digit_classifier_forward(x, padded_params, batch_tile=128)
    out = jax.block_until_ready(out)

    ref = reference_forward(x, padded_params)
    assert out.shape == (batch, OUT_DIM)
    assert jnp.allclose(out, ref, atol=2e-2, rtol=2e-2), \
        float(jnp.max(jnp.abs(out - ref)))

    print("KERNEL_OK")
</pallas_src>

<mosaic_0001>
module attributes {stable_mosaic.version = 11 : i64} {
  func.func @fused_mlp_kernel(%arg0: i32, %arg1: memref<128x896xbf16, #tpu.memory_space<vmem>>, %arg2: memref<896x128xbf16, #tpu.memory_space<vmem>>, %arg3: memref<1x128xf32, #tpu.memory_space<vmem>>, %arg4: memref<128x128xbf16, #tpu.memory_space<vmem>>, %arg5: memref<1x128xf32, #tpu.memory_space<vmem>>, %arg6: memref<128x128xbf16, #tpu.memory_space<vmem>>, %arg7: memref<1x128xf32, #tpu.memory_space<vmem>>, %arg8: memref<128x128xbf16, #tpu.memory_space<vmem>>, %arg9: memref<1x128xf32, #tpu.memory_space<vmem>>, %arg10: memref<128x128xf32, #tpu.memory_space<vmem>>) attributes {dimension_semantics = [#tpu.dimension_semantics<parallel>], iteration_bounds = array<i64: 2>, scalar_prefetch = 0 : i64, scratch_operands = 0 : i64, tpu.core_type = #tpu.core_type<tc>, window_params = [{transform_indices = @transform_0, window_bounds = array<i64: 128, 896>}, {pipeline_mode = #tpu.pipeline_mode<synchronous>, transform_indices = @transform_1, window_bounds = array<i64: 896, 128>}, {pipeline_mode = #tpu.pipeline_mode<synchronous>, transform_indices = @transform_2, window_bounds = array<i64: 1, 128>}, {pipeline_mode = #tpu.pipeline_mode<synchronous>, transform_indices = @transform_3, window_bounds = array<i64: 128, 128>}, {pipeline_mode = #tpu.pipeline_mode<synchronous>, transform_indices = @transform_4, window_bounds = array<i64: 1, 128>}, {pipeline_mode = #tpu.pipeline_mode<synchronous>, transform_indices = @transform_5, window_bounds = array<i64: 128, 128>}, {pipeline_mode = #tpu.pipeline_mode<synchronous>, transform_indices = @transform_6, window_bounds = array<i64: 1, 128>}, {pipeline_mode = #tpu.pipeline_mode<synchronous>, transform_indices = @transform_7, window_bounds = array<i64: 128, 128>}, {pipeline_mode = #tpu.pipeline_mode<synchronous>, transform_indices = @transform_8, window_bounds = array<i64: 1, 128>}, {transform_indices = @transform_9, window_bounds = array<i64: 128, 128>}]} {
    %c0 = arith.constant 0 : index
    %c0_0 = arith.constant 0 : index
    %0 = vector.load %arg1[%c0, %c0_0] : memref<128x896xbf16, #tpu.memory_space<vmem>>, vector<128x896xbf16>
    %c0_1 = arith.constant 0 : index
    %c0_2 = arith.constant 0 : index
    %1 = vector.load %arg2[%c0_1, %c0_2] : memref<896x128xbf16, #tpu.memory_space<vmem>>, vector<896x128xbf16>
    %c0_3 = arith.constant 0 : index
    %c0_4 = arith.constant 0 : index
    %2 = vector.load %arg3[%c0_3, %c0_4] : memref<1x128xf32, #tpu.memory_space<vmem>>, vector<1x128xf32>
    %cst = arith.constant dense<0.000000e+00> : vector<128x128xf32>
    %3 = tpu.matmul %0, %1, %cst {dimension_numbers = #tpu.dot_dimension_numbers<[1], [0], [0], [1], [0, 0, 1, 1], [], []>} : vector<128x896xbf16>, vector<896x128xbf16>, vector<128x128xf32> -> vector<128x128xf32>
    %4 = vector.broadcast %2 : vector<1x128xf32> to vector<128x128xf32>
    %5 = arith.addf %3, %4 : vector<128x128xf32>
    %cst_5 = arith.constant 0.000000e+00 : f32
    %6 = vector.broadcast %cst_5 : f32 to vector<128x128xf32>
    %7 = arith.maximumf %5, %6 : vector<128x128xf32>
    %8 = arith.truncf %7 : vector<128x128xf32> to vector<128x128xbf16>
    %c0_6 = arith.constant 0 : index
    %c0_7 = arith.constant 0 : index
    %9 = vector.load %arg4[%c0_6, %c0_7] : memref<128x128xbf16, #tpu.memory_space<vmem>>, vector<128x128xbf16>
    %c0_8 = arith.constant 0 : index
    %c0_9 = arith.constant 0 : index
    %10 = vector.load %arg5[%c0_8, %c0_9] : memref<1x128xf32, #tpu.memory_space<vmem>>, vector<1x128xf32>
    %cst_10 = arith.constant dense<0.000000e+00> : vector<128x128xf32>
    %11 = tpu.matmul %8, %9, %cst_10 {dimension_numbers = #tpu.dot_dimension_numbers<[1], [0], [0], [1], [0, 0, 1, 1], [], []>} : vector<128x128xbf16>, vector<128x128xbf16>, vector<128x128xf32> -> vector<128x128xf32>
    %12 = vector.broadcast %10 : vector<1x128xf32> to vector<128x128xf32>
    %13 = arith.addf %11, %12 : vector<128x128xf32>
    %cst_11 = arith.constant 0.000000e+00 : f32
    %14 = vector.broadcast %cst_11 : f32 to vector<128x128xf32>
    %15 = arith.maximumf %13, %14 : vector<128x128xf32>
    %16 = arith.truncf %15 : vector<128x128xf32> to vector<128x128xbf16>
    %c0_12 = arith.constant 0 : index
    %c0_13 = arith.constant 0 : index
    %17 = vector.load %arg6[%c0_12, %c0_13] : memref<128x128xbf16, #tpu.memory_space<vmem>>, vector<128x128xbf16>
    %c0_14 = arith.constant 0 : index
    %c0_15 = arith.constant 0 : index
    %18 = vector.load %arg7[%c0_14, %c0_15] : memref<1x128xf32, #tpu.memory_space<vmem>>, vector<1x128xf32>
    %cst_16 = arith.constant dense<0.000000e+00> : vector<128x128xf32>
    %19 = tpu.matmul %16, %17, %cst_16 {dimension_numbers = #tpu.dot_dimension_numbers<[1], [0], [0], [1], [0, 0, 1, 1], [], []>} : vector<128x128xbf16>, vector<128x128xbf16>, vector<128x128xf32> -> vector<128x128xf32>
    %20 = vector.broadcast %18 : vector<1x128xf32> to vector<128x128xf32>
    %21 = arith.addf %19, %20 : vector<128x128xf32>
    %cst_17 = arith.constant 0.000000e+00 : f32
    %22 = vector.broadcast %cst_17 : f32 to vector<128x128xf32>
    %23 = arith.maximumf %21, %22 : vector<128x128xf32>
    %24 = arith.truncf %23 : vector<128x128xf32> to vector<128x128xbf16>
    %c0_18 = arith.constant 0 : index
    %c0_19 = arith.constant 0 : index
    %25 = vector.load %arg8[%c0_18, %c0_19] : memref<128x128xbf16, #tpu.memory_space<vmem>>, vector<128x128xbf16>
    %c0_20 = arith.constant 0 : index
    %c0_21 = arith.constant 0 : index
    %26 = vector.load %arg9[%c0_20, %c0_21] : memref<1x128xf32, #tpu.memory_space<vmem>>, vector<1x128xf32>
    %cst_22 = arith.constant dense<0.000000e+00> : vector<128x128xf32>
    %27 = tpu.matmul %24, %25, %cst_22 {dimension_numbers = #tpu.dot_dimension_numbers<[1], [0], [0], [1], [0, 0, 1, 1], [], []>} : vector<128x128xbf16>, vector<128x128xbf16>, vector<128x128xf32> -> vector<128x128xf32>
    %28 = vector.broadcast %26 : vector<1x128xf32> to vector<128x128xf32>
    %29 = arith.addf %27, %28 : vector<128x128xf32>
    %cst_23 = arith.constant dense<0xFF800000> : vector<128xf32>
    %30 = vector.multi_reduction <maximumf>, %29, %cst_23 [1] : vector<128x128xf32> to vector<128xf32>
    %31 = vector.shape_cast %30 : vector<128xf32> to vector<128x1xf32>
    %32 = vector.broadcast %31 : vector<128x1xf32> to vector<128x128xf32>
    %33 = arith.subf %29, %32 : vector<128x128xf32>
    %34 = math.exp %33 : vector<128x128xf32>
    %cst_24 = arith.constant dense<0.000000e+00> : vector<128xf32>
    %35 = vector.multi_reduction <add>, %34, %cst_24 [1] : vector<128x128xf32> to vector<128xf32>
    %36 = vector.shape_cast %35 : vector<128xf32> to vector<128x1xf32>
    %37 = math.log %36 : vector<128x1xf32>
    %38 = vector.broadcast %37 : vector<128x1xf32> to vector<128x128xf32>
    %39 = arith.subf %33, %38 : vector<128x128xf32>
    %c0_25 = arith.constant 0 : index
    %c0_26 = arith.constant 0 : index
    %40 = vector.load %arg10[%c0_25, %c0_26] : memref<128x128xf32, #tpu.memory_space<vmem>>, vector<128x128xf32>
    tpu.vector_store %arg10[%c0_25, %c0_26], %39 {strides = array<i32>} : memref<128x128xf32, #tpu.memory_space<vmem>>, vector<128x128xf32>,
    return
  }
  func.func @transform_0(%arg0: i32) -> (i32, i32) {
    %c0_i32 = arith.constant 0 : i32
    %c0_i32_0 = arith.constant 0 : i32
    return %arg0, %c0_i32 : i32, i32
  }
  func.func @transform_1(%arg0: i32) -> (i32, i32) {
    %c0_i32 = arith.constant 0 : i32
    %c0_i32_0 = arith.constant 0 : i32
    %c0_i32_1 = arith.constant 0 : i32
    return %c0_i32, %c0_i32_0 : i32, i32
  }
  func.func @transform_2(%arg0: i32) -> (i32, i32) {
    %c0_i32 = arith.constant 0 : i32
    %c0_i32_0 = arith.constant 0 : i32
    %c0_i32_1 = arith.constant 0 : i32
    return %c0_i32, %c0_i32_0 : i32, i32
  }
  func.func @transform_3(%arg0: i32) -> (i32, i32) {
    %c0_i32 = arith.constant 0 : i32
    %c0_i32_0 = arith.constant 0 : i32
    %c0_i32_1 = arith.constant 0 : i32
    return %c0_i32, %c0_i32_0 : i32, i32
  }
  func.func @transform_4(%arg0: i32) -> (i32, i32) {
    %c0_i32 = arith.constant 0 : i32
    %c0_i32_0 = arith.constant 0 : i32
    %c0_i32_1 = arith.constant 0 : i32
    return %c0_i32, %c0_i32_0 : i32, i32
  }
  func.func @transform_5(%arg0: i32) -> (i32, i32) {
    %c0_i32 = arith.constant 0 : i32
    %c0_i32_0 = arith.constant 0 : i32
    %c0_i32_1 = arith.constant 0 : i32
    return %c0_i32, %c0_i32_0 : i32, i32
  }
  func.func @transform_6(%arg0: i32) -> (i32, i32) {
    %c0_i32 = arith.constant 0 : i32
    %c0_i32_0 = arith.constant 0 : i32
    %c0_i32_1 = arith.constant 0 : i32
    return %c0_i32, %c0_i32_0 : i32, i32
  }
  func.func @transform_7(%arg0: i32) -> (i32, i32) {
    %c0_i32 = arith.constant 0 : i32
    %c0_i32_0 = arith.constant 0 : i32
    %c0_i32_1 = arith.constant 0 : i32
    return %c0_i32, %c0_i32_0 : i32, i32
  }
  func.func @transform_8(%arg0: i32) -> (i32, i32) {
    %c0_i32 = arith.constant 0 : i32
    %c0_i32_0 = arith.constant 0 : i32
    %c0_i32_1 = arith.constant 0 : i32
    return %c0_i32, %c0_i32_0 : i32, i32
  }
  func.func @transform_9(%arg0: i32) -> (i32, i32) {
    %c0_i32 = arith.constant 0 : i32
    %c0_i32_0 = arith.constant 0 : i32
    return %arg0, %c0_i32 : i32, i32
  }
}

</mosaic_0001>

<llo_original>
// kernel: tpu_custom_call.1
$region0: #{tpu_custom_call.1}
  #allocation0 [shape = 'u32[]', space=smem, size = 0x4, offset = 0x4, fixed_abs, tag = 'smem constant byte address 0x4 - core index']
  #allocation1 [shape = 'u32[72,128]{1,0:T(1,128)}', space=vmem, size = 0x9000, scoped, tag = 'internal scratch']
  %s0 = inlined_call_operand.hbm [shape: bf16[256,896], index: 0, kind: input, shape index: {}]
  %s1 = inlined_call_operand.hbm [shape: bf16[896,128], index: 1, kind: input, shape index: {}]
  %s2 = inlined_call_operand.vmem [shape: f32[1,128], index: 2, kind: input, shape index: {}]
  %s3 = inlined_call_operand.hbm [shape: bf16[128,128], index: 3, kind: input, shape index: {}]
  %s4 = inlined_call_operand.vmem [shape: f32[1,128], index: 4, kind: input, shape index: {}]
  %s5 = inlined_call_operand.hbm [shape: bf16[128,128], index: 5, kind: input, shape index: {}]
  %s6 = inlined_call_operand.vmem [shape: f32[1,128], index: 6, kind: input, shape index: {}]
  %s7 = inlined_call_operand.hbm [shape: bf16[128,128], index: 7, kind: input, shape index: {}]
  %s8 = inlined_call_operand.vmem [shape: f32[1,128], index: 8, kind: input, shape index: {}]
  %s9 = inlined_call_operand.hbm [shape: f32[256,128], index: 9, kind: output, shape index: {}]
  %s10 = sld [smem:[#allocation0]]
  $region89: #{tpu_custom_call.1} parent=0
    _
  %s12 = ssub.s32 1, %s10
  %s13 = scalar_select 0, %s12, %s10
  $region1: #{tpu_custom_call.1} parent=0
    #allocation2 [shape = 'u8[458752]{0}', space=vmem, size = 0x70000, scoped, tag = 'input window, operand 0']
    #allocation3 [shape = 's32[2]{0}', space=sflag, size = 0x8, scoped, tag = 'scoped memory for tpu_custom_call.1']
    #allocation4 [shape = 's32[2]{0}', space=sflag, size = 0x8, scoped, tag = 'scoped memory for tpu_custom_call.1']
    #allocation5 [shape = 'u8[229376]{0}', space=vmem, size = 0x38000, scoped, tag = 'input window, operand 1, single buffered']
    #allocation6 [shape = 's32[1]{0}', space=sflag, size = 0x4, scoped, tag = 'scoped memory for tpu_custom_call.1']
    #allocation7 [shape = 'u8[32768]{0}', space=vmem, size = 0x8000, scoped, tag = 'input window, operand 3, single buffered']
    #allocation8 [shape = 'u8[32768]{0}', space=vmem, size = 0x8000, scoped, tag = 'input window, operand 5, single buffered']
    #allocation9 [shape = 's32[1]{0}', space=sflag, size = 0x4, scoped, tag = 'scoped memory for tpu_custom_call.1']
    #allocation10 [shape = 'u8[32768]{0}', space=vmem, size = 0x8000, scoped, tag = 'input window, operand 7, single buffered']
    #allocation11 [shape = 'u8[131072]{0}', space=vmem, size = 0x20000, scoped, tag = 'output window, operand 0']
    %14 = vsyncpa [#allocation3], 0
    %s15 = scalar_lea.sflag [#allocation3], 1
    %16 = vsyncpa %s15, 0
    %17 = vsyncpa [#allocation6], 0
    %18 = vsyncpa [#allocation9], 0
    %19 = vsyncpa [#allocation4], 0
    %s20 = scalar_lea.sflag [#allocation4], 1
    %21 = vsyncpa %s20, 0
    loop: start=0, step=1, limit=4
    $region2: #{tpu_custom_call.1} parent=1 // loop_pre_header
      _
    $region3: #{tpu_custom_call.1} parent=1 // loop_header
      %s23 = sphi 0, %s27
      %p24 = scmp.ge.s32.totalorder %s23, 4
      %s33 = sphi 0, %s35
      %s36 = sphi 0, %s33
      %s37 = sphi 0, %s36
      %s53 = sphi 0, %s37
      %s57 = sphi 0, %s57
      %s59 = sphi 0, %s57
      %s60 = sphi 0, %s59
      %s74 = sphi 0, %s60
      %s78 = sphi 0, %s78
      %s80 = sphi 0, %s78
      %s81 = sphi 0, %s80
      %s95 = sphi 0, %s81
      %s99 = sphi 0, %s99
      %s101 = sphi 0, %s99
      %s102 = sphi 0, %s101
      %s116 = sphi 0, %s102
      %s120 = sphi 0, %s120
      %s122 = sphi 0, %s120
      %s123 = sphi 0, %s122
      %s137 = sphi 0, %s123
      %s141 = sphi 0, %s141
      %s143 = sphi 0, %s141
      %s144 = sphi 0, %s143
      %s158 = sphi 0, %s144
      %s162 = sphi 0, %s162
      %s164 = sphi 0, %s162
      %s165 = sphi 0, %s164
      %s179 = sphi 0, %s165
      %s183 = sphi 0, %s183
      %s185 = sphi 0, %s183
      %s186 = sphi 0, %s185
      %s200 = sphi 0, %s186
      %s204 = sphi 0, %s204
      %s206 = sphi 0, %s204
      %s207 = sphi 0, %s206
      %s221 = sphi 0, %s207
      %s227 = sphi 0, %s229
      %s230 = sphi 0, %s227
      %s231 = sphi 0, %s230
      %s247 = sphi 0, %s231
    $region4: #{tpu_custom_call.1} parent=1 // loop_header_branch
      %26 = sbr.rel (%p24) target = $region8
    $region5: #{tpu_custom_call.1} parent=1 // loop_body
      %s28 = ssub.s32 %s23, 1
      %s29 = ssub.s32 %s23, 2
      %s30 = sadd.s32 %s23, 1
      %s31 = ssub.s32 %s23, %s30
      %p32 = scmp.eq.s32.totalorder %s31, 0
      %s34 = sadd.s32 %s33, 1
      %s35 = scalar_select %p32, %s33, %s34
      %p38 = pneg %p32
      %p39 = scmp.eq.s32.totalorder %s23, 1
      %p40 = por %p38, %p39
      %p41 = scmp.ne.s32.totalorder %s33, %s36
      %p42 = scmp.eq.s32.totalorder %s23, 0
      %p43 = por %p41, %p42
      %p44 = scmp.ne.s32.totalorder %s33, %s36
      %p45 = scmp.eq.s32.totalorder %s28, 1
      %p46 = por %p44, %p45
      %p47 = scmp.ne.s32.totalorder %s36, %s37
      %p48 = scmp.eq.s32.totalorder %s28, 0
      %p49 = por %p47, %p48
      %p50 = scmp.ne.s32.totalorder %s36, %s37
      %p51 = scmp.eq.s32.totalorder %s29, 1
      %p52 = por %p50, %p51
      %p54 = scmp.ne.s32.totalorder %s37, %s53
      %p55 = scmp.eq.s32.totalorder %s29, 0
      %p56 = por %p54, %p55
      %s58 = sadd.s32 %s57, 1
      %p61 = scmp.eq.s32.totalorder %s23, 1
      %p62 = scmp.ne.s32.totalorder %s57, %s59
      %p63 = scmp.eq.s32.totalorder %s23, 0
      %p64 = por %p62, %p63
      %p65 = scmp.ne.s32.totalorder %s57, %s59
      %p66 = scmp.eq.s32.totalorder %s28, 1
      %p67 = por %p65, %p66
      %p68 = scmp.ne.s32.totalorder %s59, %s60
      %p69 = scmp.eq.s32.totalorder %s28, 0
      %p70 = por %p68, %p69
      %p71 = scmp.ne.s32.totalorder %s59, %s60
      %p72 = scmp.eq.s32.totalorder %s29, 1
      %p73 = por %p71, %p72
      %p75 = scmp.ne.s32.totalorder %s60, %s74
      %p76 = scmp.eq.s32.totalorder %s29, 0
      %p77 = por %p75, %p76
      %s79 = sadd.s32 %s78, 1
      %p82 = scmp.eq.s32.totalorder %s23, 1
      %p83 = scmp.ne.s32.totalorder %s78, %s80
      %p84 = scmp.eq.s32.totalorder %s23, 0
      %p85 = por %p83, %p84
      %p86 = scmp.ne.s32.totalorder %s78, %s80
      %p87 = scmp.eq.s32.totalorder %s28, 1
      %p88 = por %p86, %p87
      %p89 = scmp.ne.s32.totalorder %s80, %s81
      %p90 = scmp.eq.s32.totalorder %s28, 0
      %p91 = por %p89, %p90
      %p92 = scmp.ne.s32.totalorder %s80, %s81
      %p93 = scmp.eq.s32.totalorder %s29, 1
      %p94 = por %p92, %p93
      %p96 = scmp.ne.s32.totalorder %s81, %s95
      %p97 = scmp.eq.s32.totalorder %s29, 0
      %p98 = por %p96, %p97
      %s100 = sadd.s32 %s99, 1
      %p103 = scmp.eq.s32.totalorder %s23, 1
      %p104 = scmp.ne.s32.totalorder %s99, %s101
      %p105 = scmp.eq.s32.totalorder %s23, 0
      %p106 = por %p104, %p105
      %p107 = scmp.ne.s32.totalorder %s99, %s101
      %p108 = scmp.eq.s32.totalorder %s28, 1
      %p109 = por %p107, %p108
      %p110 = scmp.ne.s32.totalorder %s101, %s102
      %p111 = scmp.eq.s32.totalorder %s28, 0
      %p112 = por %p110, %p111
      %p113 = scmp.ne.s32.totalorder %s101, %s102
      %p114 = scmp.eq.s32.totalorder %s29, 1
      %p115 = por %p113, %p114
      %p117 = scmp.ne.s32.totalorder %s102, %s116
      %p118 = scmp.eq.s32.totalorder %s29, 0
      %p119 = por %p117, %p118
      %s121 = sadd.s32 %s120, 1
      %p124 = scmp.eq.s32.totalorder %s23, 1
      %p125 = scmp.ne.s32.totalorder %s120, %s122
      %p126 = scmp.eq.s32.totalorder %s23, 0
      %p127 = por %p125, %p126
      %p128 = scmp.ne.s32.totalorder %s120, %s122
      %p129 = scmp.eq.s32.totalorder %s28, 1
      %p130 = por %p128, %p129
      %p131 = scmp.ne.s32.totalorder %s122, %s123
      %p132 = scmp.eq.s32.totalorder %s28, 0
      %p133 = por %p131, %p132
      %p134 = scmp.ne.s32.totalorder %s122, %s123
      %p135 = scmp.eq.s32.totalorder %s29, 1
      %p136 = por %p134, %p135
      %p138 = scmp.ne.s32.totalorder %s123, %s137
      %p139 = scmp.eq.s32.totalorder %s29, 0
      %p140 = por %p138, %p139
      %s142 = sadd.s32 %s141, 1
      %p145 = scmp.eq.s32.totalorder %s23, 1
      %p146 = scmp.ne.s32.totalorder %s141, %s143
      %p147 = scmp.eq.s32.totalorder %s23, 0
      %p148 = por %p146, %p147
      %p149 = scmp.ne.s32.totalorder %s141, %s143
      %p150 = scmp.eq.s32.totalorder %s28, 1
      %p151 = por %p149, %p150
      %p152 = scmp.ne.s32.totalorder %s143, %s144
      %p153 = scmp.eq.s32.totalorder %s28, 0
      %p154 = por %p152, %p153
      %p155 = scmp.ne.s32.totalorder %s143, %s144
      %p156 = scmp.eq.s32.totalorder %s29, 1
      %p157 = por %p155, %p156
      %p159 = scmp.ne.s32.totalorder %s144, %s158
      %p160 = scmp.eq.s32.totalorder %s29, 0
      %p161 = por %p159, %p160
      %s163 = sadd.s32 %s162, 1
      %p166 = scmp.eq.s32.totalorder %s23, 1
      %p167 = scmp.ne.s32.totalorder %s162, %s164
      %p168 = scmp.eq.s32.totalorder %s23, 0
      %p169 = por %p167, %p168
      %p170 = scmp.ne.s32.totalorder %s162, %s164
      %p171 = scmp.eq.s32.totalorder %s28, 1
      %p172 = por %p170, %p171
      %p173 = scmp.ne.s32.totalorder %s164, %s165
      %p174 = scmp.eq.s32.totalorder %s28, 0
      %p175 = por %p173, %p174
      %p176 = scmp.ne.s32.totalorder %s164, %s165
      %p177 = scmp.eq.s32.totalorder %s29, 1
      %p178 = por %p176, %p177
      %p180 = scmp.ne.s32.totalorder %s165, %s179
      %p181 = scmp.eq.s32.totalorder %s29, 0
      %p182 = por %p180, %p181
      %s184 = sadd.s32 %s183, 1
      %p187 = scmp.eq.s32.totalorder %s23, 1
      %p188 = scmp.ne.s32.totalorder %s183, %s185
      %p189 = scmp.eq.s32.totalorder %s23, 0
      %p190 = por %p188, %p189
      %p191 = scmp.ne.s32.totalorder %s183, %s185
      %p192 = scmp.eq.s32.totalorder %s28, 1
      %p193 = por %p191, %p192
      %p194 = scmp.ne.s32.totalorder %s185, %s186
      %p195 = scmp.eq.s32.totalorder %s28, 0
      %p196 = por %p194, %p195
      %p197 = scmp.ne.s32.totalorder %s185, %s186
      %p198 = scmp.eq.s32.totalorder %s29, 1
      %p199 = por %p197, %p198
      %p201 = scmp.ne.s32.totalorder %s186, %s200
      %p202 = scmp.eq.s32.totalorder %s29, 0
      %p203 = por %p201, %p202
      %s205 = sadd.s32 %s204, 1
      %p208 = scmp.eq.s32.totalorder %s23, 1
      %p209 = scmp.ne.s32.totalorder %s204, %s206
      %p210 = scmp.eq.s32.totalorder %s23, 0
      %p211 = por %p209, %p210
      %p212 = scmp.ne.s32.totalorder %s204, %s206
      %p213 = scmp.eq.s32.totalorder %s28, 1
      %p214 = por %p212, %p213
      %p215 = scmp.ne.s32.totalorder %s206, %s207
      %p216 = scmp.eq.s32.totalorder %s28, 0
      %p217 = por %p215, %p216
      %p218 = scmp.ne.s32.totalorder %s206, %s207
      %p219 = scmp.eq.s32.totalorder %s29, 1
      %p220 = por %p218, %p219
      %p222 = scmp.ne.s32.totalorder %s207, %s221
      %p223 = scmp.eq.s32.totalorder %s29, 0
      %p224 = por %p222, %p223
      %s225 = ssub.s32 %s23, %s30
      %p226 = scmp.eq.s32.totalorder %s225, 0
      %s228 = sadd.s32 %s227, 1
      %s229 = scalar_select %p226, %s227, %s228
      %p232 = pneg %p226
      %p233 = scmp.eq.s32.totalorder %s23, 1
      %p234 = por %p232, %p233
      %p235 = scmp.ne.s32.totalorder %s227, %s230
      %p236 = scmp.eq.s32.totalorder %s23, 0
      %p237 = por %p235, %p236
      %p238 = scmp.ne.s32.totalorder %s227, %s230
      %p239 = scmp.eq.s32.totalorder %s28, 1
      %p240 = por %p238, %p239
      %p241 = scmp.ne.s32.totalorder %s230, %s231
      %p242 = scmp.eq.s32.totalorder %s28, 0
      %p243 = por %p241, %p242
      %p244 = scmp.ne.s32.totalorder %s230, %s231
      %p245 = scmp.eq.s32.totalorder %s29, 1
      %p246 = por %p244, %p245
      %p248 = scmp.ne.s32.totalorder %s231, %s247
      %p249 = scmp.eq.s32.totalorder %s29, 0
      %p250 = por %p248, %p249
      %p251 = scmp.le.s32.totalorder 1, %s23
      %p252 = scmp.lt.s32.totalorder %s23, 3
      %p253 = pnand %p251, %p252
      %p254 = pneg %p253
      // Predicated region
      $region9: #{tpu_custom_call.1} parent=5 // pred_check
        _
      $region10: #{tpu_custom_call.1} parent=5 // pred_check_branch
        %256 = sbr.rel (%p253) target = $region12
      $region11: #{tpu_custom_call.1} parent=5 // pred_region
        %s257 = ssub.s32 %s23, 1
        // Predicated region
        $region13: #{tpu_custom_call.1} parent=11 // pred_check
          %p258 = pneg %p70
        $region14: #{tpu_custom_call.1} parent=11 // pred_check_branch
          %260 = sbr.rel (%p258) target = $region16
        $region15: #{tpu_custom_call.1} parent=11 // pred_region
          %262 = vsyncadd [#allocation6], 0
          %s263 = sshll.u32 %s1, 4
          %s264 = int_to_ptr.hbm [resolvable:$true] %s263
          %s265 = sshll.u32 [#allocation5], 4
          %s266 = int_to_ptr.vmem [resolvable:$true] %s265
          %271 = dma.hbm_to_vmem [thread:$0]  %s264, 7168, %s266, [#allocation6], 64, 64, 4
        $region16: #{tpu_custom_call.1} parent=11 // pred_fallthru
          _
        // Predicated region
        $region17: #{tpu_custom_call.1} parent=11 // pred_check
          %p272 = pneg %p91
        $region18: #{tpu_custom_call.1} parent=11 // pred_check_branch
          %274 = sbr.rel (%p272) target = $region20
        $region19: #{tpu_custom_call.1} parent=11 // pred_region
          _
        $region20: #{tpu_custom_call.1} parent=11 // pred_fallthru
          _
        // Predicated region
        $region21: #{tpu_custom_call.1} parent=11 // pred_check
          %p275 = pneg %p112
        $region22: #{tpu_custom_call.1} parent=11 // pred_check_branch
          %277 = sbr.rel (%p275) target = $region24
        $region23: #{tpu_custom_call.1} parent=11 // pred_region
          %279 = vsyncadd [#allocation6], 0
          %s280 = sshll.u32 %s3, 4
          %s281 = int_to_ptr.hbm [resolvable:$true] %s280
          %s282 = sshll.u32 [#allocation7], 4
          %s283 = int_to_ptr.vmem [resolvable:$true] %s282
          %288 = dma.hbm_to_vmem [thread:$0]  %s281, 1024, %s283, [#allocation6], 64, 64, 4
        $region24: #{tpu_custom_call.1} parent=11 // pred_fallthru
          _
        // Predicated region
        $region25: #{tpu_custom_call.1} parent=11 // pred_check
          %p289 = pneg %p133
        $region26: #{tpu_custom_call.1} parent=11 // pred_check_branch
          %291 = sbr.rel (%p289) target = $region28
        $region27: #{tpu_custom_call.1} parent=11 // pred_region
          _
        $region28: #{tpu_custom_call.1} parent=11 // pred_fallthru
          _
        // Predicated region
        $region29: #{tpu_custom_call.1} parent=11 // pred_check
          %p292 = pneg %p154
        $region30: #{tpu_custom_call.1} parent=11 // pred_check_branch
          %294 = sbr.rel (%p292) target = $region32
        $region31: #{tpu_custom_call.1} parent=11 // pred_region
          %296 = vsyncadd [#allocation9], 0
          %s297 = sshll.u32 %s5, 4
          %s298 = int_to_ptr.hbm [resolvable:$true] %s297
          %s299 = sshll.u32 [#allocation8], 4
          %s300 = int_to_ptr.vmem [resolvable:$true] %s299
          %305 = dma.hbm_to_vmem [thread:$0]  %s298, 1024, %s300, [#allocation9], 64, 64, 4
        $region32: #{tpu_custom_call.1} parent=11 // pred_fallthru
          _
        // Predicated region
        $region33: #{tpu_custom_call.1} parent=11 // pred_check
          %p306 = pneg %p175
        $region34: #{tpu_custom_call.1} parent=11 // pred_check_branch
          %308 = sbr.rel (%p306) target = $region36
        $region35: #{tpu_custom_call.1} parent=11 // pred_region
          _
        $region36: #{tpu_custom_call.1} parent=11 // pred_fallthru
          _
        // Predicated region
        $region37: #{tpu_custom_call.1} parent=11 // pred_check
          %p309 = pneg %p196
        $region38: #{tpu_custom_call.1} parent=11 // pred_check_branch
          %311 = sbr.rel (%p309) target = $region40
        $region39: #{tpu_custom_call.1} parent=11 // pred_region
          %313 = vsyncadd [#allocation9], 0
          %s314 = sshll.u32 %s7, 4
          %s315 = int_to_ptr.hbm [resolvable:$true] %s314
          %s316 = sshll.u32 [#allocation10], 4
          %s317 = int_to_ptr.vmem [resolvable:$true] %s316
          %322 = dma.hbm_to_vmem [thread:$0]  %s315, 1024, %s317, [#allocation9], 64, 64, 4
        $region40: #{tpu_custom_call.1} parent=11 // pred_fallthru
          _
        // Predicated region
        $region41: #{tpu_custom_call.1} parent=11 // pred_check
          %p323 = pneg %p217
        $region42: #{tpu_custom_call.1} parent=11 // pred_check_branch
          %325 = sbr.rel (%p323) target = $region44
        $region43: #{tpu_custom_call.1} parent=11 // pred_region
          _
        $region44: #{tpu_custom_call.1} parent=11 // pred_fallthru
          _
      $region12: #{tpu_custom_call.1} parent=5 // pred_fallthru
        _
      %p326 = scmp.lt.s32.totalorder %s23, 2
      // Predicated region
      $region45: #{tpu_custom_call.1} parent=5 // pred_check
        %p327 = pneg %p326
      $region46: #{tpu_custom_call.1} parent=5 // pred_check_branch
        %329 = sbr.rel (%p327) target = $region48
      $region47: #{tpu_custom_call.1} parent=5 // pred_region
        // Predicated region
        $region49: #{tpu_custom_call.1} parent=47 // pred_check
          %p330 = pneg %p43
        $region50: #{tpu_custom_call.1} parent=47 // pred_check_branch
          %332 = sbr.rel (%p330) target = $region52
        $region51: #{tpu_custom_call.1} parent=47 // pred_region
          %s333 = sand.u32 %s33, 1
          %s334 = scalar_lea.sflag [#allocation3], %s333
          %s335 = sand.u32 %s33, 1
          %s336 = smul.addr %s335, 448
          %s337 = scalar_lea.vmem [#allocation2], %s336
          %s338 = smul.u32 16, %s23
          %340 = vsyncadd %s334, 0
          %s341 = smul.addr %s338, 7
          %s342 = smul.addr %s341, 4
          %s343 = scalar_lea.hbm %s0, %s342
          %s344 = sshll.u32 %s343, 4
          %s345 = int_to_ptr.hbm [resolvable:$true] %s344
          %s346 = sshll.u32 %s337, 4
          %s347 = int_to_ptr.vmem [resolvable:$true] %s346
          %352 = dma.hbm_to_vmem [thread:$0]  %s345, 7168, %s347, %s334, 448, 448, 28
        $region52: #{tpu_custom_call.1} parent=47 // pred_fallthru
          _
      $region48: #{tpu_custom_call.1} parent=5 // pred_fallthru
        _
      %p353 = scmp.le.s32.totalorder 1, %s23
      %p354 = scmp.lt.s32.totalorder %s23, 3
      %p355 = pnand %p353, %p354
      %p356 = pneg %p355
      // Predicated region
      $region53: #{tpu_custom_call.1} parent=5 // pred_check
        _
      $region54: #{tpu_custom_call.1} parent=5 // pred_check_branch
        %358 = sbr.rel (%p355) target = $region56
      $region55: #{tpu_custom_call.1} parent=5 // pred_region
        %s359 = ssub.s32 %s23, 1
        %s360 = sand.u32 %s36, 1
        %s361 = scalar_lea.sflag [#allocation3], %s360
        %s362 = sand.u32 %s36, 1
        %s363 = smul.addr %s362, 448
        %s364 = scalar_lea.vmem [#allocation2], %s363
        // Predicated region
        $region57: #{tpu_custom_call.1} parent=55 // pred_check
          %p365 = pneg %p49
        $region58: #{tpu_custom_call.1} parent=55 // pred_check_branch
          %367 = sbr.rel (%p365) target = $region60
        $region59: #{tpu_custom_call.1} parent=55 // pred_region
          %369 = dma.done %s361, 7168
        $region60: #{tpu_custom_call.1} parent=55 // pred_fallthru
          _
        // Predicated region
        $region61: #{tpu_custom_call.1} parent=55 // pred_check
          %p370 = pneg %p70
        $region62: #{tpu_custom_call.1} parent=55 // pred_check_branch
          %372 = sbr.rel (%p370) target = $region64
        $region63: #{tpu_custom_call.1} parent=55 // pred_region
          %374 = dma.done [#allocation6], 7168
        $region64: #{tpu_custom_call.1} parent=55 // pred_fallthru
          _
        // Predicated region
        $region65: #{tpu_custom_call.1} parent=55 // pred_check
          %p375 = pneg %p112
        $region66: #{tpu_custom_call.1} parent=55 // pred_check_branch
          %377 = sbr.rel (%p375) target = $region68
        $region67: #{tpu_custom_call.1} parent=55 // pred_region
          %379 = dma.done [#allocation6], 1024
        $region68: #{tpu_custom_call.1} parent=55 // pred_fallthru
          _
        // Predicated region
        $region69: #{tpu_custom_call.1} parent=55 // pred_check
          %p380 = pneg %p154
        $region70: #{tpu_custom_call.1} parent=55 // pred_check_branch
          %382 = sbr.rel (%p380) target = $region72
        $region71: #{tpu_custom_call.1} parent=55 // pred_region
          %384 = dma.done [#allocation9], 1024
        $region72: #{tpu_custom_call.1} parent=55 // pred_fallthru
          _
        // Predicated region
        $region73: #{tpu_custom_call.1} parent=55 // pred_check
          %p385 = pneg %p196
        $region74: #{tpu_custom_call.1} parent=55 // pred_check_branch
          %387 = sbr.rel (%p385) target = $region76
        $region75: #{tpu_custom_call.1} parent=55 // pred_region
          %389 = dma.done [#allocation9], 1024
        $region76: #{tpu_custom_call.1} parent=55 // pred_fallthru
          _
        %s390 = sand.u32 %s36, 1
        %s391 = scalar_lea.sflag [#allocation3], %s390
        %s392 = sand.u32 %s36, 1
        %s393 = smul.addr %s392, 448
        %s394 = scalar_lea.vmem [#allocation2], %s393
        %p395 = pneg %p49
        %p396 = pneg %p46
        %p397 = pneg %p70
        %p398 = pneg %p67
        %p399 = pneg %p91
        %p400 = pneg %p88
        %p401 = pneg %p112
        %p402 = pneg %p109
        %p403 = pneg %p133
        %p404 = pneg %p130
        %p405 = pneg %p154
        %p406 = pneg %p151
        %p407 = pneg %p175
        %p408 = pneg %p172
        %p409 = pneg %p196
        %p410 = pneg %p193
        %p411 = pneg %p217
        %p412 = pneg %p214
        %p413 = pneg %p243
        %p414 = pneg %p240
        %s415 = sand.u32 %s230, 1
        %s416 = scalar_lea.sflag [#allocation4], %s415
        %s417 = sand.u32 %s230, 1
        %s418 = smul.addr %s417, 128
        %s419 = scalar_lea.vmem [#allocation11], %s418
        %s420 = smul.u32 16, %s28
        %s421 = smul.u32 16, %s28
        %v422 = vld [vmem:[%s364] sm:$0xff]
        %v423 = vld [vmem:[%s364 + $0x8] sm:$0xff]
        %v424 = vld [vmem:[%s364 + $0x10] sm:$0xff]
        %v425 = vld [vmem:[%s364 + $0x18] sm:$0xf]
        %v426 = vld [vmem:[%s364 + $0x1c] sm:$0xff]
        %v427 = vld [vmem:[%s364 + $0x24] sm:$0xff]
        %v428 = vld [vmem:[%s364 + $0x2c] sm:$0xff]
        %v429 = vld [vmem:[%s364 + $0x34] sm:$0xf]
        %v430 = vld [vmem:[%s364 + $0x38] sm:$0xff]
        %v431 = vld [vmem:[%s364 + $0x40] sm:$0xff]
        %v432 = vld [vmem:[%s364 + $0x48] sm:$0xff]
        %v433 = vld [vmem:[%s364 + $0x50] sm:$0xf]
        %v434 = vld [vmem:[%s364 + $0x54] sm:$0xff]
        %v435 = vld [vmem:[%s364 + $0x5c] sm:$0xff]
        %v436 = vld [vmem:[%s364 + $0x64] sm:$0xff]
        %v437 = vld [vmem:[%s364 + $0x6c] sm:$0xf]
        %v438 = vld [vmem:[%s364 + $0x70] sm:$0xff]
        %v439 = vld [vmem:[%s364 + $0x78] sm:$0xff]
        %v440 = vld [vmem:[%s364 + $0x80] sm:$0xff]
        %v441 = vld [vmem:[%s364 + $0x88] sm:$0xf]
        %v442 = vld [vmem:[%s364 + $0x8c] sm:$0xff]
        %v443 = vld [vmem:[%s364 + $0x94] sm:$0xff]
        %v444 = vld [vmem:[%s364 + $0x9c] sm:$0xff]
        %v445 = vld [vmem:[%s364 + $0xa4] sm:$0xf]
        %v446 = vld [vmem:[%s364 + $0xa8] sm:$0xff]
        %v447 = vld [vmem:[%s364 + $0xb0] sm:$0xff]
        %v448 = vld [vmem:[%s364 + $0xb8] sm:$0xff]
        %v449 = vld [vmem:[%s364 + $0xc0] sm:$0xf]
        %v450 = vld [vmem:[%s364 + $0xc4] sm:$0xff]
        %v451 = vld [vmem:[%s364 + $0xcc] sm:$0xff]
        %v452 = vld [vmem:[%s364 + $0xd4] sm:$0xff]
        %v453 = vld [vmem:[%s364 + $0xdc] sm:$0xf]
        %v454 = vld [vmem:[%s364 + $0xe0] sm:$0xff]
        %v455 = vld [vmem:[%s364 + $0xe8] sm:$0xff]
        %v456 = vld [vmem:[%s364 + $0xf0] sm:$0xff]
        %v457 = vld [vmem:[%s364 + $0xf8] sm:$0xf]
        %v458 = vld [vmem:[%s364 + $0xfc] sm:$0xff]
        %v459 = vld [vmem:[%s364 + $0x104] sm:$0xff]
        %v460 = vld [vmem:[%s364 + $0x10c] sm:$0xff]
        %v461 = vld [vmem:[%s364 + $0x114] sm:$0xf]
        %v462 = vld [vmem:[%s364 + $0x118] sm:$0xff]
        %v463 = vld [vmem:[%s364 + $0x120] sm:$0xff]
        %v464 = vld [vmem:[%s364 + $0x128] sm:$0xff]
        %v465 = vld [vmem:[%s364 + $0x130] sm:$0xf]
        %v466 = vld [vmem:[%s364 + $0x134] sm:$0xff]
        %v467 = vld [vmem:[%s364 + $0x13c] sm:$0xff]
        %v468 = vld [vmem:[%s364 + $0x144] sm:$0xff]
        %v469 = vld [vmem:[%s364 + $0x14c] sm:$0xf]
        %v470 = vld [vmem:[%s364 + $0x150] sm:$0xff]
        %v471 = vld [vmem:[%s364 + $0x158] sm:$0xff]
        %v472 = vld [vmem:[%s364 + $0x160] sm:$0xff]
        %v473 = vld [vmem:[%s364 + $0x168] sm:$0xf]
        %v474 = vld [vmem:[%s364 + $0x16c] sm:$0xff]
        %v475 = vld [vmem:[%s364 + $0x174] sm:$0xff]
        %v476 = vld [vmem:[%s364 + $0x17c] sm:$0xff]
        %v477 = vld [vmem:[%s364 + $0x184] sm:$0xf]
        %v478 = vld [vmem:[%s364 + $0x188] sm:$0xff]
        %v479 = vld [vmem:[%s364 + $0x190] sm:$0xff]
        %v480 = vld [vmem:[%s364 + $0x198] sm:$0xff]
        %v481 = vld [vmem:[%s364 + $0x1a0] sm:$0xf]
        %v482 = vld [vmem:[%s364 + $0x1a4] sm:$0xff]
        %v483 = vld [vmem:[%s364 + $0x1ac] sm:$0xff]
        %v484 = vld [vmem:[%s364 + $0x1b4] sm:$0xff]
        %v485 = vld [vmem:[%s364 + $0x1bc] sm:$0xf]
        %v486 = vld [vmem:[#allocation5] sm:$0xf]
        %v487 = vld [vmem:[#allocation5 + $0x4] sm:$0xf]
        %v488 = vld [vmem:[#allocation5 + $0x8] sm:$0xf]
        %v489 = vld [vmem:[#allocation5 + $0xc] sm:$0xf]
        %v490 = vld [vmem:[#allocation5 + $0x10] sm:$0xf]
        %v491 = vld [vmem:[#allocation5 + $0x14] sm:$0xf]
        %v492 = vld [vmem:[#allocation5 + $0x18] sm:$0xf]
        %v493 = vld [vmem:[#allocation5 + $0x1c] sm:$0xf]
        %v494 = vld [vmem:[#allocation5 + $0x20] sm:$0xf]
        %v495 = vld [vmem:[#allocation5 + $0x24] sm:$0xf]
        %v496 = vld [vmem:[#allocation5 + $0x28] sm:$0xf]
        %v497 = vld [vmem:[#allocation5 + $0x2c] sm:$0xf]
        %v498 = vld [vmem:[#allocation5 + $0x30] sm:$0xf]
        %v499 = vld [vmem:[#allocation5 + $0x34] sm:$0xf]
        %v500 = vld [vmem:[#allocation5 + $0x38] sm:$0xf]
        %v501 = vld [vmem:[#allocation5 + $0x3c] sm:$0xf]
        %v502 = vld [vmem:[#allocation5 + $0x40] sm:$0xf]
        %v503 = vld [vmem:[#allocation5 + $0x44] sm:$0xf]
        %v504 = vld [vmem:[#allocation5 + $0x48] sm:$0xf]
        %v505 = vld [vmem:[#allocation5 + $0x4c] sm:$0xf]
        %v506 = vld [vmem:[#allocation5 + $0x50] sm:$0xf]
        %v507 = vld [vmem:[#allocation5 + $0x54] sm:$0xf]
        %v508 = vld [vmem:[#allocation5 + $0x58] sm:$0xf]
        %v509 = vld [vmem:[#allocation5 + $0x5c] sm:$0xf]
        %v510 = vld [vmem:[#allocation5 + $0x60] sm:$0xf]
        %v511 = vld [vmem:[#allocation5 + $0x64] sm:$0xf]
        %v512 = vld [vmem:[#allocation5 + $0x68] sm:$0xf]
        %v513 = vld [vmem:[#allocation5 + $0x6c] sm:$0xf]
        %v514 = vld [vmem:[#allocation5 + $0x70] sm:$0xf]
        %v515 = vld [vmem:[#allocation5 + $0x74] sm:$0xf]
        %v516 = vld [vmem:[#allocation5 + $0x78] sm:$0xf]
        %v517 = vld [vmem:[#allocation5 + $0x7c] sm:$0xf]
        %v518 = vld [vmem:[#allocation5 + $0x80] sm:$0xf]
        %v519 = vld [vmem:[#allocation5 + $0x84] sm:$0xf]
        %v520 = vld [vmem:[#allocation5 + $0x88] sm:$0xf]
        %v521 = vld [vmem:[#allocation5 + $0x8c] sm:$0xf]
        %v522 = vld [vmem:[#allocation5 + $0x90] sm:$0xf]
        %v523 = vld [vmem:[#allocation5 + $0x94] sm:$0xf]
        %v524 = vld [vmem:[#allocation5 + $0x98] sm:$0xf]
        %v525 = vld [vmem:[#allocation5 + $0x9c] sm:$0xf]
        %v526 = vld [vmem:[#allocation5 + $0xa0] sm:$0xf]
        %v527 = vld [vmem:[#allocation5 + $0xa4] sm:$0xf]
        %v528 = vld [vmem:[#allocation5 + $0xa8] sm:$0xf]
        %v529 = vld [vmem:[#allocation5 + $0xac] sm:$0xf]
        %v530 = vld [vmem:[#allocation5 + $0xb0] sm:$0xf]
        %v531 = vld [vmem:[#allocation5 + $0xb4] sm:$0xf]
        %v532 = vld [vmem:[#allocation5 + $0xb8] sm:$0xf]
        %v533 = vld [vmem:[#allocation5 + $0xbc] sm:$0xf]
        %v534 = vld [vmem:[#allocation5 + $0xc0] sm:$0xf]
        %v535 = vld [vmem:[#allocation5 + $0xc4] sm:$0xf]
        %v536 = vld [vmem:[#allocation5 + $0xc8] sm:$0xf]
        %v537 = vld [vmem:[#allocation5 + $0xcc] sm:$0xf]
        %v538 = vld [vmem:[#allocation5 + $0xd0] sm:$0xf]
        %v539 = vld [vmem:[#allocation5 + $0xd4] sm:$0xf]
        %v540 = vld [vmem:[#allocation5 + $0xd8] sm:$0xf]
        %v541 = vld [vmem:[#allocation5 + $0xdc] sm:$0xf]
        %v542 = vld [vmem:[#allocation5 + $0xe0] sm:$0xf]
        %v543 = vld [vmem:[#allocation5 + $0xe4] sm:$0xf]
        %v544 = vld [vmem:[#allocation5 + $0xe8] sm:$0xf]
        %v545 = vld [vmem:[#allocation5 + $0xec] sm:$0xf]
        %v546 = vld [vmem:[#allocation5 + $0xf0] sm:$0xf]
        %v547 = vld [vmem:[#allocation5 + $0xf4] sm:$0xf]
        %v548 = vld [vmem:[#allocation5 + $0xf8] sm:$0xf]
        %v549 = vld [vmem:[#allocation5 + $0xfc] sm:$0xf]
        %v550 = vld [vmem:[#allocation5 + $0x100] sm:$0xf]
        %v551 = vld [vmem:[#allocation5 + $0x104] sm:$0xf]
        %v552 = vld [vmem:[#allocation5 + $0x108] sm:$0xf]
        %v553 = vld [vmem:[#allocation5 + $0x10c] sm:$0xf]
        %v554 = vld [vmem:[#allocation5 + $0x110] sm:$0xf]
        %v555 = vld [vmem:[#allocation5 + $0x114] sm:$0xf]
        %v556 = vld [vmem:[#allocation5 + $0x118] sm:$0xf]
        %v557 = vld [vmem:[#allocation5 + $0x11c] sm:$0xf]
        %v558 = vld [vmem:[#allocation5 + $0x120] sm:$0xf]
        %v559 = vld [vmem:[#allocation5 + $0x124] sm:$0xf]
        %v560 = vld [vmem:[#allocation5 + $0x128] sm:$0xf]
        %v561 = vld [vmem:[#allocation5 + $0x12c] sm:$0xf]
        %v562 = vld [vmem:[#allocation5 + $0x130] sm:$0xf]
        %v563 = vld [vmem:[#allocation5 + $0x134] sm:$0xf]
        %v564 = vld [vmem:[#allocation5 + $0x138] sm:$0xf]
        %v565 = vld [vmem:[#allocation5 + $0x13c] sm:$0xf]
        %v566 = vld [vmem:[#allocation5 + $0x140] sm:$0xf]
        %v567 = vld [vmem:[#allocation5 + $0x144] sm:$0xf]
        %v568 = vld [vmem:[#allocation5 + $0x148] sm:$0xf]
        %v569 = vld [vmem:[#allocation5 + $0x14c] sm:$0xf]
        %v570 = vld [vmem:[#allocation5 + $0x150] sm:$0xf]
        %v571 = vld [vmem:[#allocation5 + $0x154] sm:$0xf]
        %v572 = vld [vmem:[#allocation5 + $0x158] sm:$0xf]
        %v573 = vld [vmem:[#allocation5 + $0x15c] sm:$0xf]
        %v574 = vld [vmem:[#allocation5 + $0x160] sm:$0xf]
        %v575 = vld [vmem:[#allocation5 + $0x164] sm:$0xf]
        %v576 = vld [vmem:[#allocation5 + $0x168] sm:$0xf]
        %v577 = vld [vmem:[#allocation5 + $0x16c] sm:$0xf]
        %v578 = vld [vmem:[#allocation5 + $0x170] sm:$0xf]
        %v579 = vld [vmem:[#allocation5 + $0x174] sm:$0xf]
        %v580 = vld [vmem:[#allocation5 + $0x178] sm:$0xf]
        %v581 = vld [vmem:[#allocation5 + $0x17c] sm:$0xf]
        %v582 = vld [vmem:[#allocation5 + $0x180] sm:$0xf]
        %v583 = vld [vmem:[#allocation5 + $0x184] sm:$0xf]
        %v584 = vld [vmem:[#allocation5 + $0x188] sm:$0xf]
        %v585 = vld [vmem:[#allocation5 + $0x18c] sm:$0xf]
        %v586 = vld [vmem:[#allocation5 + $0x190] sm:$0xf]
        %v587 = vld [vmem:[#allocation5 + $0x194] sm:$0xf]
        %v588 = vld [vmem:[#allocation5 + $0x198] sm:$0xf]
        %v589 = vld [vmem:[#allocation5 + $0x19c] sm:$0xf]
        %v590 = vld [vmem:[#allocation5 + $0x1a0] sm:$0xf]
        %v591 = vld [vmem:[#allocation5 + $0x1a4] sm:$0xf]
        %v592 = vld [vmem:[#allocation5 + $0x1a8] sm:$0xf]
        %v593 = vld [vmem:[#allocation5 + $0x1ac] sm:$0xf]
        %v594 = vld [vmem:[#allocation5 + $0x1b0] sm:$0xf]
        %v595 = vld [vmem:[#allocation5 + $0x1b4] sm:$0xf]
        %v596 = vld [vmem:[#allocation5 + $0x1b8] sm:$0xf]
        %v597 = vld [vmem:[#allocation5 + $0x1bc] sm:$0xf]
        %v598 = vld [vmem:[%s2] sm:$0x1]
        %v600 = vperm.slane %v598, 0
        %v666 = vunpack.c.l.b16 %v422
        %v667 = vunpack.c.h.b16 %v422
        %v668 = vunpack.c.l.b16 %v423
        %v669 = vunpack.c.h.b16 %v423
        %v670 = vunpack.c.l.b16 %v424
        %v671 = vunpack.c.h.b16 %v424
        %v672 = vunpack.c.l.b16 %v425
        %v673 = vunpack.c.l.b16 %v426
        %v674 = vunpack.c.h.b16 %v426
        %v675 = vunpack.c.l.b16 %v427
        %v676 = vunpack.c.h.b16 %v427
        %v677 = vunpack.c.l.b16 %v428
        %v678 = vunpack.c.h.b16 %v428
        %v679 = vunpack.c.l.b16 %v429
        %v680 = vunpack.c.l.b16 %v430
        %v681 = vunpack.c.h.b16 %v430
        %v682 = vunpack.c.l.b16 %v431
        %v683 = vunpack.c.h.b16 %v431
        %v684 = vunpack.c.l.b16 %v432
        %v685 = vunpack.c.h.b16 %v432
        %v686 = vunpack.c.l.b16 %v433
        %v687 = vunpack.c.l.b16 %v434
        %v688 = vunpack.c.h.b16 %v434
        %v689 = vunpack.c.l.b16 %v435
        %v690 = vunpack.c.h.b16 %v435
        %v691 = vunpack.c.l.b16 %v436
        %v692 = vunpack.c.h.b16 %v436
        %v693 = vunpack.c.l.b16 %v437
        %v694 = vunpack.c.l.b16 %v438
        %v695 = vunpack.c.h.b16 %v438
        %v696 = vunpack.c.l.b16 %v439
        %v697 = vunpack.c.h.b16 %v439
        %v698 = vunpack.c.l.b16 %v440
        %v699 = vunpack.c.h.b16 %v440
        %v700 = vunpack.c.l.b16 %v441
        %v701 = vunpack.c.l.b16 %v442
        %v702 = vunpack.c.h.b16 %v442
        %v703 = vunpack.c.l.b16 %v443
        %v704 = vunpack.c.h.b16 %v443
        %v705 = vunpack.c.l.b16 %v444
        %v706 = vunpack.c.h.b16 %v444
        %v707 = vunpack.c.l.b16 %v445
        %v708 = vunpack.c.l.b16 %v446
        %v709 = vunpack.c.h.b16 %v446
        %v710 = vunpack.c.l.b16 %v447
        %v711 = vunpack.c.h.b16 %v447
        %v712 = vunpack.c.l.b16 %v448
        %v713 = vunpack.c.h.b16 %v448
        %v714 = vunpack.c.l.b16 %v449
        %v715 = vunpack.c.l.b16 %v450
        %v716 = vunpack.c.h.b16 %v450
        %v717 = vunpack.c.l.b16 %v451
        %v718 = vunpack.c.h.b16 %v451
        %v719 = vunpack.c.l.b16 %v452
        %v720 = vunpack.c.h.b16 %v452
        %v721 = vunpack.c.l.b16 %v453
        %v722 = vunpack.c.l.b16 %v454
        %v723 = vunpack.c.h.b16 %v454
        %v724 = vunpack.c.l.b16 %v455
        %v725 = vunpack.c.h.b16 %v455
        %v726 = vunpack.c.l.b16 %v456
        %v727 = vunpack.c.h.b16 %v456
        %v728 = vunpack.c.l.b16 %v457
        %v729 = vunpack.c.l.b16 %v458
        %v730 = vunpack.c.h.b16 %v458
        %v731 = vunpack.c.l.b16 %v459
        %v732 = vunpack.c.h.b16 %v459
        %v733 = vunpack.c.l.b16 %v460
        %v734 = vunpack.c.h.b16 %v460
        %v735 = vunpack.c.l.b16 %v461
        %v736 = vunpack.c.l.b16 %v462
        %v737 = vunpack.c.h.b16 %v462
        %v738 = vunpack.c.l.b16 %v463
        %v739 = vunpack.c.h.b16 %v463
        %v740 = vunpack.c.l.b16 %v464
        %v741 = vunpack.c.h.b16 %v464
        %v742 = vunpack.c.l.b16 %v465
        %v743 = vunpack.c.l.b16 %v466
        %v744 = vunpack.c.h.b16 %v466
        %v745 = vunpack.c.l.b16 %v467
        %v746 = vunpack.c.h.b16 %v467
        %v747 = vunpack.c.l.b16 %v468
        %v748 = vunpack.c.h.b16 %v468
        %v749 = vunpack.c.l.b16 %v469
        %v750 = vunpack.c.l.b16 %v470
        %v751 = vunpack.c.h.b16 %v470
        %v752 = vunpack.c.l.b16 %v471
        %v753 = vunpack.c.h.b16 %v471
        %v754 = vunpack.c.l.b16 %v472
        %v755 = vunpack.c.h.b16 %v472
        %v756 = vunpack.c.l.b16 %v473
        %v757 = vunpack.c.l.b16 %v474
        %v758 = vunpack.c.h.b16 %v474
        %v759 = vunpack.c.l.b16 %v475
        %v760 = vunpack.c.h.b16 %v475
        %v761 = vunpack.c.l.b16 %v476
        %v762 = vunpack.c.h.b16 %v476
        %v763 = vunpack.c.l.b16 %v477
        %v764 = vunpack.c.l.b16 %v478
        %v765 = vunpack.c.h.b16 %v478
        %v766 = vunpack.c.l.b16 %v479
        %v767 = vunpack.c.h.b16 %v479
        %v768 = vunpack.c.l.b16 %v480
        %v769 = vunpack.c.h.b16 %v480
        %v770 = vunpack.c.l.b16 %v481
        %v771 = vunpack.c.l.b16 %v482
        %v772 = vunpack.c.h.b16 %v482
        %v773 = vunpack.c.l.b16 %v483
        %v774 = vunpack.c.h.b16 %v483
        %v775 = vunpack.c.l.b16 %v484
        %v776 = vunpack.c.h.b16 %v484
        %v777 = vunpack.c.l.b16 %v485
        %v778 = vpack.c.b16 %v673, %v666
        %v779 = vpack.c.b16 %v674, %v667
        %v780 = vpack.c.b16 %v675, %v668
        %v781 = vpack.c.b16 %v676, %v669
        %v782 = vpack.c.b16 %v677, %v670
        %v783 = vpack.c.b16 %v678, %v671
        %v784 = vpack.c.b16 %v679, %v672
        %v785 = vpack.c.b16 %v687, %v680
        %v786 = vpack.c.b16 %v688, %v681
        %v787 = vpack.c.b16 %v689, %v682
        %v788 = vpack.c.b16 %v690, %v683
        %v789 = vpack.c.b16 %v691, %v684
        %v790 = vpack.c.b16 %v692, %v685
        %v791 = vpack.c.b16 %v693, %v686
        %v792 = vpack.c.b16 %v701, %v694
        %v793 = vpack.c.b16 %v702, %v695
        %v794 = vpack.c.b16 %v703, %v696
        %v795 = vpack.c.b16 %v704, %v697
        %v796 = vpack.c.b16 %v705, %v698
        %v797 = vpack.c.b16 %v706, %v699
        %v798 = vpack.c.b16 %v707, %v700
        %v799 = vpack.c.b16 %v715, %v708
        %v800 = vpack.c.b16 %v716, %v709
        %v801 = vpack.c.b16 %v717, %v710
        %v802 = vpack.c.b16 %v718, %v711
        %v803 = vpack.c.b16 %v719, %v712
        %v804 = vpack.c.b16 %v720, %v713
        %v805 = vpack.c.b16 %v721, %v714
        %v806 = vpack.c.b16 %v729, %v722
        %v807 = vpack.c.b16 %v730, %v723
        %v808 = vpack.c.b16 %v731, %v724
        %v809 = vpack.c.b16 %v732, %v725
        %v810 = vpack.c.b16 %v733, %v726
        %v811 = vpack.c.b16 %v734, %v727
        %v812 = vpack.c.b16 %v735, %v728
        %v813 = vpack.c.b16 %v743, %v736
        %v814 = vpack.c.b16 %v744, %v737
        %v815 = vpack.c.b16 %v745, %v738
        %v816 = vpack.c.b16 %v746, %v739
        %v817 = vpack.c.b16 %v747, %v740
        %v818 = vpack.c.b16 %v748, %v741
        %v819 = vpack.c.b16 %v749, %v742
        %v820 = vpack.c.b16 %v757, %v750
        %v821 = vpack.c.b16 %v758, %v751
        %v822 = vpack.c.b16 %v759, %v752
        %v823 = vpack.c.b16 %v760, %v753
        %v824 = vpack.c.b16 %v761, %v754
        %v825 = vpack.c.b16 %v762, %v755
        %v826 = vpack.c.b16 %v763, %v756
        %v827 = vpack.c.b16 %v771, %v764
        %v828 = vpack.c.b16 %v772, %v765
        %v829 = vpack.c.b16 %v773, %v766
        %v830 = vpack.c.b16 %v774, %v767
        %v831 = vpack.c.b16 %v775, %v768
        %v832 = vpack.c.b16 %v776, %v769
        %v833 = vpack.c.b16 %v777, %v770
        %v1002 = vunpack.c.l.b16 %v486
        %v1003 = vunpack.c.l.b16 %v487
        %v1004 = vunpack.c.l.b16 %v488
        %v1005 = vunpack.c.l.b16 %v489
        %v1006 = vunpack.c.l.b16 %v490
        %v1007 = vunpack.c.l.b16 %v491
        %v1008 = vunpack.c.l.b16 %v492
        %v1009 = vunpack.c.l.b16 %v493
        %v1010 = vunpack.c.l.b16 %v494
        %v1011 = vunpack.c.l.b16 %v495
        %v1012 = vunpack.c.l.b16 %v496
        %v1013 = vunpack.c.l.b16 %v497
        %v1014 = vunpack.c.l.b16 %v498
        %v1015 = vunpack.c.l.b16 %v499
        %v1016 = vunpack.c.l.b16 %v500
        %v1017 = vunpack.c.l.b16 %v501
        %v1018 = vunpack.c.l.b16 %v502
        %v1019 = vunpack.c.l.b16 %v503
        %v1020 = vunpack.c.l.b16 %v504
        %v1021 = vunpack.c.l.b16 %v505
        %v1022 = vunpack.c.l.b16 %v506
        %v1023 = vunpack.c.l.b16 %v507
        %v1024 = vunpack.c.l.b16 %v508
        %v1025 = vunpack.c.l.b16 %v509
        %v1026 = vunpack.c.l.b16 %v510
        %v1027 = vunpack.c.l.b16 %v511
        %v1028 = vunpack.c.l.b16 %v512
        %v1029 = vunpack.c.l.b16 %v513
        %v1030 = vunpack.c.l.b16 %v514
        %v1031 = vunpack.c.l.b16 %v515
        %v1032 = vunpack.c.l.b16 %v516
        %v1033 = vunpack.c.l.b16 %v517
        %v1034 = vunpack.c.l.b16 %v518
        %v1035 = vunpack.c.l.b16 %v519
        %v1036 = vunpack.c.l.b16 %v520
        %v1037 = vunpack.c.l.b16 %v521
        %v1038 = vunpack.c.l.b16 %v522
        %v1039 = vunpack.c.l.b16 %v523
        %v1040 = vunpack.c.l.b16 %v524
        %v1041 = vunpack.c.l.b16 %v525
        %v1042 = vunpack.c.l.b16 %v526
        %v1043 = vunpack.c.l.b16 %v527
        %v1044 = vunpack.c.l.b16 %v528
        %v1045 = vunpack.c.l.b16 %v529
        %v1046 = vunpack.c.l.b16 %v530
        %v1047 = vunpack.c.l.b16 %v531
        %v1048 = vunpack.c.l.b16 %v532
        %v1049 = vunpack.c.l.b16 %v533
        %v1050 = vunpack.c.l.b16 %v534
        %v1051 = vunpack.c.l.b16 %v535
        %v1052 = vunpack.c.l.b16 %v536
        %v1053 = vunpack.c.l.b16 %v537
        %v1054 = vunpack.c.l.b16 %v538
        %v1055 = vunpack.c.l.b16 %v539
        %v1056 = vunpack.c.l.b16 %v540
        %v1057 = vunpack.c.l.b16 %v541
        %v1058 = vunpack.c.l.b16 %v542
        %v1059 = vunpack.c.l.b16 %v543
        %v1060 = vunpack.c.l.b16 %v544
        %v1061 = vunpack.c.l.b16 %v545
        %v1062 = vunpack.c.l.b16 %v546
        %v1063 = vunpack.c.l.b16 %v547
        %v1064 = vunpack.c.l.b16 %v548
        %v1065 = vunpack.c.l.b16 %v549
        %v1066 = vunpack.c.l.b16 %v550
        %v1067 = vunpack.c.l.b16 %v551
        %v1068 = vunpack.c.l.b16 %v552
        %v1069 = vunpack.c.l.b16 %v553
        %v1070 = vunpack.c.l.b16 %v554
        %v1071 = vunpack.c.l.b16 %v555
        %v1072 = vunpack.c.l.b16 %v556
        %v1073 = vunpack.c.l.b16 %v557
        %v1074 = vunpack.c.l.b16 %v558
        %v1075 = vunpack.c.l.b16 %v559
        %v1076 = vunpack.c.l.b16 %v560
        %v1077 = vunpack.c.l.b16 %v561
        %v1078 = vunpack.c.l.b16 %v562
        %v1079 = vunpack.c.l.b16 %v563
        %v1080 = vunpack.c.l.b16 %v564
        %v1081 = vunpack.c.l.b16 %v565
        %v1082 = vunpack.c.l.b16 %v566
        %v1083 = vunpack.c.l.b16 %v567
        %v1084 = vunpack.c.l.b16 %v568
        %v1085 = vunpack.c.l.b16 %v569
        %v1086 = vunpack.c.l.b16 %v570
        %v1087 = vunpack.c.l.b16 %v571
        %v1088 = vunpack.c.l.b16 %v572
        %v1089 = vunpack.c.l.b16 %v573
        %v1090 = vunpack.c.l.b16 %v574
        %v1091 = vunpack.c.l.b16 %v575
        %v1092 = vunpack.c.l.b16 %v576
        %v1093 = vunpack.c.l.b16 %v577
        %v1094 = vunpack.c.l.b16 %v578
        %v1095 = vunpack.c.l.b16 %v579
        %v1096 = vunpack.c.l.b16 %v580
        %v1097 = vunpack.c.l.b16 %v581
        %v1098 = vunpack.c.l.b16 %v582
        %v1099 = vunpack.c.l.b16 %v583
        %v1100 = vunpack.c.l.b16 %v584
        %v1101 = vunpack.c.l.b16 %v585
        %v1102 = vunpack.c.l.b16 %v586
        %v1103 = vunpack.c.l.b16 %v587
        %v1104 = vunpack.c.l.b16 %v588
        %v1105 = vunpack.c.l.b16 %v589
        %v1106 = vunpack.c.l.b16 %v590
        %v1107 = vunpack.c.l.b16 %v591
        %v1108 = vunpack.c.l.b16 %v592
        %v1109 = vunpack.c.l.b16 %v593
        %v1110 = vunpack.c.l.b16 %v594
        %v1111 = vunpack.c.l.b16 %v595
        %v1112 = vunpack.c.l.b16 %v596
        %v1113 = vunpack.c.l.b16 %v597
        %v1114 = vpack.c.b16 %v1003, %v1002
        %v1115 = vpack.c.b16 %v1005, %v1004
        %v1116 = vpack.c.b16 %v1007, %v1006
        %v1117 = vpack.c.b16 %v1009, %v1008
        %v1118 = vpack.c.b16 %v1011, %v1010
        %v1119 = vpack.c.b16 %v1013, %v1012
        %v1120 = vpack.c.b16 %v1015, %v1014
        %v1121 = vpack.c.b16 %v1017, %v1016
        %v1122 = vpack.c.b16 %v1019, %v1018
        %v1123 = vpack.c.b16 %v1021, %v1020
        %v1124 = vpack.c.b16 %v1023, %v1022
        %v1125 = vpack.c.b16 %v1025, %v1024
        %v1126 = vpack.c.b16 %v1027, %v1026
        %v1127 = vpack.c.b16 %v1029, %v1028
        %v1128 = vpack.c.b16 %v1031, %v1030
        %v1129 = vpack.c.b16 %v1033, %v1032
        %v1130 = vpack.c.b16 %v1035, %v1034
        %v1131 = vpack.c.b16 %v1037, %v1036
        %v1132 = vpack.c.b16 %v1039, %v1038
        %v1133 = vpack.c.b16 %v1041, %v1040
        %v1134 = vpack.c.b16 %v1043, %v1042
        %v1135 = vpack.c.b16 %v1045, %v1044
        %v1136 = vpack.c.b16 %v1047, %v1046
        %v1137 = vpack.c.b16 %v1049, %v1048
        %v1138 = vpack.c.b16 %v1051, %v1050
        %v1139 = vpack.c.b16 %v1053, %v1052
        %v1140 = vpack.c.b16 %v1055, %v1054
        %v1141 = vpack.c.b16 %v1057, %v1056
        %v1142 = vpack.c.b16 %v1059, %v1058
        %v1143 = vpack.c.b16 %v1061, %v1060
        %v1144 = vpack.c.b16 %v1063, %v1062
        %v1145 = vpack.c.b16 %v1065, %v1064
        %v1146 = vpack.c.b16 %v1067, %v1066
        %v1147 = vpack.c.b16 %v1069, %v1068
        %v1148 = vpack.c.b16 %v1071, %v1070
        %v1149 = vpack.c.b16 %v1073, %v1072
        %v1150 = vpack.c.b16 %v1075, %v1074
        %v1151 = vpack.c.b16 %v1077, %v1076
        %v1152 = vpack.c.b16 %v1079, %v1078
        %v1153 = vpack.c.b16 %v1081, %v1080
        %v1154 = vpack.c.b16 %v1083, %v1082
        %v1155 = vpack.c.b16 %v1085, %v1084
        %v1156 = vpack.c.b16 %v1087, %v1086
        %v1157 = vpack.c.b16 %v1089, %v1088
        %v1158 = vpack.c.b16 %v1091, %v1090
        %v1159 = vpack.c.b16 %v1093, %v1092
        %v1160 = vpack.c.b16 %v1095, %v1094
        %v1161 = vpack.c.b16 %v1097, %v1096
        %v1162 = vpack.c.b16 %v1099, %v1098
        %v1163 = vpack.c.b16 %v1101, %v1100
        %v1164 = vpack.c.b16 %v1103, %v1102
        %v1165 = vpack.c.b16 %v1105, %v1104
        %v1166 = vpack.c.b16 %v1107, %v1106
        %v1167 = vpack.c.b16 %v1109, %v1108
        %v1168 = vpack.c.b16 %v1111, %v1110
        %v1169 = vpack.c.b16 %v1113, %v1112
        %1226 = vmatpush.bf16.msra.mxu0 %v1121
        %1227 = vmatpush.bf16.msra.mxu0 %v1120
        %1228 = vmatpush.bf16.msra.mxu0 %v1119
        %1229 = vmatpush.bf16.msra.mxu0 %v1118
        %1230 = vmatpush.bf16.msra.mxu0 %v1117
        %1231 = vmatpush.bf16.msra.mxu0 %v1116
        %1232 = vmatpush.bf16.msra.mxu0 %v1115
        %1233 = vmatpush.bf16.msra.mxu0 %v1114
        %1234 = vmatmul.bf16.gmra.mxu0 %v778
        %v1235 = vpop.f32.mrf.mxu0
        %v1236 = vadd.f32 %v600, %v1235
        %v1237 = vpop.f32.mrf.mxu0
        %v1238 = vadd.f32 %v600, %v1237
        %1239 = vmatmul.bf16.gmra.mxu0 %v785
        %v1240 = vpop.f32.mrf.mxu0
        %v1241 = vadd.f32 %v600, %v1240
        %v1242 = vpop.f32.mrf.mxu0
        %v1243 = vadd.f32 %v600, %v1242
        %1244 = vmatmul.bf16.gmra.mxu0 %v792
        %v1245 = vpop.f32.mrf.mxu0
        %v1246 = vadd.f32 %v600, %v1245
        %v1247 = vpop.f32.mrf.mxu0
        %v1248 = vadd.f32 %v600, %v1247
        %1249 = vmatmul.bf16.gmra.mxu0 %v799
        %v1250 = vpop.f32.mrf.mxu0
        %v1251 = vadd.f32 %v600, %v1250
        %v1252 = vpop.f32.mrf.mxu0
        %v1253 = vadd.f32 %v600, %v1252
        %1254 = vmatmul.bf16.gmra.mxu0 %v806
        %v1255 = vpop.f32.mrf.mxu0
        %v1256 = vadd.f32 %v600, %v1255
        %v1257 = vpop.f32.mrf.mxu0
        %v1258 = vadd.f32 %v600, %v1257
        %1259 = vmatmul.bf16.gmra.mxu0 %v813
        %v1260 = vpop.f32.mrf.mxu0
        %v1261 = vadd.f32 %v600, %v1260
        %v1262 = vpop.f32.mrf.mxu0
        %v1263 = vadd.f32 %v600, %v1262
        %1264 = vmatmul.bf16.gmra.mxu0 %v820
        %v1265 = vpop.f32.mrf.mxu0
        %v1266 = vadd.f32 %v600, %v1265
        %v1267 = vpop.f32.mrf.mxu0
        %v1268 = vadd.f32 %v600, %v1267
        %1269 = vmatmul.bf16.gmra.mxu0 %v827
        %v1270 = vpop.f32.mrf.mxu0
        %v1271 = vadd.f32 %v600, %v1270
        %v1272 = vpop.f32.mrf.mxu0
        %v1273 = vadd.f32 %v600, %v1272
        %1274 = vdwg.mxu0
        %1275 = vmatpush.bf16.msra.mxu0 %v1129
        %1276 = vmatpush.bf16.msra.mxu0 %v1128
        %1277 = vmatpush.bf16.msra.mxu0 %v1127
        %1278 = vmatpush.bf16.msra.mxu0 %v1126
        %1279 = vmatpush.bf16.msra.mxu0 %v1125
        %1280 = vmatpush.bf16.msra.mxu0 %v1124
        %1281 = vmatpush.bf16.msra.mxu0 %v1123
        %1282 = vmatpush.bf16.msra.mxu0 %v1122
        %1283 = vmatmul.bf16.gmra.mxu0 %v779
        %v1284 = vpop.f32.mrf.mxu0
        %v1285 = vadd.f32 %v1236, %v1284
        %v1286 = vpop.f32.mrf.mxu0
        %v1287 = vadd.f32 %v1238, %v1286
        %1288 = vmatmul.bf16.gmra.mxu0 %v786
        %v1289 = vpop.f32.mrf.mxu0
        %v1290 = vadd.f32 %v1241, %v1289
        %v1291 = vpop.f32.mrf.mxu0
        %v1292 = vadd.f32 %v1243, %v1291
        %1293 = vmatmul.bf16.gmra.mxu0 %v793
        %v1294 = vpop.f32.mrf.mxu0
        %v1295 = vadd.f32 %v1246, %v1294
        %v1296 = vpop.f32.mrf.mxu0
        %v1297 = vadd.f32 %v1248, %v1296
        %1298 = vmatmul.bf16.gmra.mxu0 %v800
        %v1299 = vpop.f32.mrf.mxu0
        %v1300 = vadd.f32 %v1251, %v1299
        %v1301 = vpop.f32.mrf.mxu0
        %v1302 = vadd.f32 %v1253, %v1301
        %1303 = vmatmul.bf16.gmra.mxu0 %v807
        %v1304 = vpop.f32.mrf.mxu0
        %v1305 = vadd.f32 %v1256, %v1304
        %v1306 = vpop.f32.mrf.mxu0
        %v1307 = vadd.f32 %v1258, %v1306
        %1308 = vmatmul.bf16.gmra.mxu0 %v814
        %v1309 = vpop.f32.mrf.mxu0
        %v1310 = vadd.f32 %v1261, %v1309
        %v1311 = vpop.f32.mrf.mxu0
        %v1312 = vadd.f32 %v1263, %v1311
        %1313 = vmatmul.bf16.gmra.mxu0 %v821
        %v1314 = vpop.f32.mrf.mxu0
        %v1315 = vadd.f32 %v1266, %v1314
        %v1316 = vpop.f32.mrf.mxu0
        %v1317 = vadd.f32 %v1268, %v1316
        %1318 = vmatmul.bf16.gmra.mxu0 %v828
        %v1319 = vpop.f32.mrf.mxu0
        %v1320 = vadd.f32 %v1271, %v1319
        %v1321 = vpop.f32.mrf.mxu0
        %v1322 = vadd.f32 %v1273, %v1321
        %1323 = vdwg.mxu0
        %1324 = vmatpush.bf16.msra.mxu0 %v1137
        %1325 = vmatpush.bf16.msra.mxu0 %v1136
        %1326 = vmatpush.bf16.msra.mxu0 %v1135
        %1327 = vmatpush.bf16.msra.mxu0 %v1134
        %1328 = vmatpush.bf16.msra.mxu0 %v1133
        %1329 = vmatpush.bf16.msra.mxu0 %v1132
        %1330 = vmatpush.bf16.msra.mxu0 %v1131
        %1331 = vmatpush.bf16.msra.mxu0 %v1130
        %1332 = vmatmul.bf16.gmra.mxu0 %v780
        %v1333 = vpop.f32.mrf.mxu0
        %v1334 = vadd.f32 %v1285, %v1333
        %v1335 = vpop.f32.mrf.mxu0
        %v1336 = vadd.f32 %v1287, %v1335
        %1337 = vmatmul.bf16.gmra.mxu0 %v787
        %v1338 = vpop.f32.mrf.mxu0
        %v1339 = vadd.f32 %v1290, %v1338
        %v1340 = vpop.f32.mrf.mxu0
        %v1341 = vadd.f32 %v1292, %v1340
        %1342 = vmatmul.bf16.gmra.mxu0 %v794
        %v1343 = vpop.f32.mrf.mxu0
        %v1344 = vadd.f32 %v1295, %v1343
        %v1345 = vpop.f32.mrf.mxu0
        %v1346 = vadd.f32 %v1297, %v1345
        %1347 = vmatmul.bf16.gmra.mxu0 %v801
        %v1348 = vpop.f32.mrf.mxu0
        %v1349 = vadd.f32 %v1300, %v1348
        %v1350 = vpop.f32.mrf.mxu0
        %v1351 = vadd.f32 %v1302, %v1350
        %1352 = vmatmul.bf16.gmra.mxu0 %v808
        %v1353 = vpop.f32.mrf.mxu0
        %v1354 = vadd.f32 %v1305, %v1353
        %v1355 = vpop.f32.mrf.mxu0
        %v1356 = vadd.f32 %v1307, %v1355
        %1357 = vmatmul.bf16.gmra.mxu0 %v815
        %v1358 = vpop.f32.mrf.mxu0
        %v1359 = vadd.f32 %v1310, %v1358
        %v1360 = vpop.f32.mrf.mxu0
        %v1361 = vadd.f32 %v1312, %v1360
        %1362 = vmatmul.bf16.gmra.mxu0 %v822
        %v1363 = vpop.f32.mrf.mxu0
        %v1364 = vadd.f32 %v1315, %v1363
        %v1365 = vpop.f32.mrf.mxu0
        %v1366 = vadd.f32 %v1317, %v1365
        %1367 = vmatmul.bf16.gmra.mxu0 %v829
        %v1368 = vpop.f32.mrf.mxu0
        %v1369 = vadd.f32 %v1320, %v1368
        %v1370 = vpop.f32.mrf.mxu0
        %v1371 = vadd.f32 %v1322, %v1370
        %1372 = vdwg.mxu0
        %1373 = vmatpush.bf16.msra.mxu0 %v1145
        %1374 = vmatpush.bf16.msra.mxu0 %v1144
        %1375 = vmatpush.bf16.msra.mxu0 %v1143
        %1376 = vmatpush.bf16.msra.mxu0 %v1142
        %1377 = vmatpush.bf16.msra.mxu0 %v1141
        %1378 = vmatpush.bf16.msra.mxu0 %v1140
        %1379 = vmatpush.bf16.msra.mxu0 %v1139
        %1380 = vmatpush.bf16.msra.mxu0 %v1138
        %1381 = vmatmul.bf16.gmra.mxu0 %v781
        %v1382 = vpop.f32.mrf.mxu0
        %v1383 = vadd.f32 %v1334, %v1382
        %v1384 = vpop.f32.mrf.mxu0
        %v1385 = vadd.f32 %v1336, %v1384
        %1386 = vmatmul.bf16.gmra.mxu0 %v788
        %v1387 = vpop.f32.mrf.mxu0
        %v1388 = vadd.f32 %v1339, %v1387
        %v1389 = vpop.f32.mrf.mxu0
        %v1390 = vadd.f32 %v1341, %v1389
        %1391 = vmatmul.bf16.gmra.mxu0 %v795
        %v1392 = vpop.f32.mrf.mxu0
        %v1393 = vadd.f32 %v1344, %v1392
        %v1394 = vpop.f32.mrf.mxu0
        %v1395 = vadd.f32 %v1346, %v1394
        %1396 = vmatmul.bf16.gmra.mxu0 %v802
        %v1397 = vpop.f32.mrf.mxu0
        %v1398 = vadd.f32 %v1349, %v1397
        %v1399 = vpop.f32.mrf.mxu0
        %v1400 = vadd.f32 %v1351, %v1399
        %1401 = vmatmul.bf16.gmra.mxu0 %v809
        %v1402 = vpop.f32.mrf.mxu0
        %v1403 = vadd.f32 %v1354, %v1402
        %v1404 = vpop.f32.mrf.mxu0
        %v1405 = vadd.f32 %v1356, %v1404
        %1406 = vmatmul.bf16.gmra.mxu0 %v816
        %v1407 = vpop.f32.mrf.mxu0
        %v1408 = vadd.f32 %v1359, %v1407
        %v1409 = vpop.f32.mrf.mxu0
        %v1410 = vadd.f32 %v1361, %v1409
        %1411 = vmatmul.bf16.gmra.mxu0 %v823
        %v1412 = vpop.f32.mrf.mxu0
        %v1413 = vadd.f32 %v1364, %v1412
        %v1414 = vpop.f32.mrf.mxu0
        %v1415 = vadd.f32 %v1366, %v1414
        %1416 = vmatmul.bf16.gmra.mxu0 %v830
        %v1417 = vpop.f32.mrf.mxu0
        %v1418 = vadd.f32 %v1369, %v1417
        %v1419 = vpop.f32.mrf.mxu0
        %v1420 = vadd.f32 %v1371, %v1419
        %1421 = vdwg.mxu0
        %1422 = vmatpush.bf16.msra.mxu0 %v1153
        %1423 = vmatpush.bf16.msra.mxu0 %v1152
        %1424 = vmatpush.bf16.msra.mxu0 %v1151
        %1425 = vmatpush.bf16.msra.mxu0 %v1150
        %1426 = vmatpush.bf16.msra.mxu0 %v1149
        %1427 = vmatpush.bf16.msra.mxu0 %v1148
        %1428 = vmatpush.bf16.msra.mxu0 %v1147
        %1429 = vmatpush.bf16.msra.mxu0 %v1146
        %1430 = vmatmul.bf16.gmra.mxu0 %v782
        %v1431 = vpop.f32.mrf.mxu0
        %v1432 = vadd.f32 %v1383, %v1431
        %v1433 = vpop.f32.mrf.mxu0
        %v1434 = vadd.f32 %v1385, %v1433
        %1435 = vmatmul.bf16.gmra.mxu0 %v789
        %v1436 = vpop.f32.mrf.mxu0
        %v1437 = vadd.f32 %v1388, %v1436
        %v1438 = vpop.f32.mrf.mxu0
        %v1439 = vadd.f32 %v1390, %v1438
        %1440 = vmatmul.bf16.gmra.mxu0 %v796
        %v1441 = vpop.f32.mrf.mxu0
        %v1442 = vadd.f32 %v1393, %v1441
        %v1443 = vpop.f32.mrf.mxu0
        %v1444 = vadd.f32 %v1395, %v1443
        %1445 = vmatmul.bf16.gmra.mxu0 %v803
        %v1446 = vpop.f32.mrf.mxu0
        %v1447 = vadd.f32 %v1398, %v1446
        %v1448 = vpop.f32.mrf.mxu0
        %v1449 = vadd.f32 %v1400, %v1448
        %1450 = vmatmul.bf16.gmra.mxu0 %v810
        %v1451 = vpop.f32.mrf.mxu0
        %v1452 = vadd.f32 %v1403, %v1451
        %v1453 = vpop.f32.mrf.mxu0
        %v1454 = vadd.f32 %v1405, %v1453
        %1455 = vmatmul.bf16.gmra.mxu0 %v817
        %v1456 = vpop.f32.mrf.mxu0
        %v1457 = vadd.f32 %v1408, %v1456
        %v1458 = vpop.f32.mrf.mxu0
        %v1459 = vadd.f32 %v1410, %v1458
        %1460 = vmatmul.bf16.gmra.mxu0 %v824
        %v1461 = vpop.f32.mrf.mxu0
        %v1462 = vadd.f32 %v1413, %v1461
        %v1463 = vpop.f32.mrf.mxu0
        %v1464 = vadd.f32 %v1415, %v1463
        %1465 = vmatmul.bf16.gmra.mxu0 %v831
        %v1466 = vpop.f32.mrf.mxu0
        %v1467 = vadd.f32 %v1418, %v1466
        %v1468 = vpop.f32.mrf.mxu0
        %v1469 = vadd.f32 %v1420, %v1468
        %1470 = vdwg.mxu0
        %1471 = vmatpush.bf16.msra.mxu0 %v1161
        %1472 = vmatpush.bf16.msra.mxu0 %v1160
        %1473 = vmatpush.bf16.msra.mxu0 %v1159
        %1474 = vmatpush.bf16.msra.mxu0 %v1158
        %1475 = vmatpush.bf16.msra.mxu0 %v1157
        %1476 = vmatpush.bf16.msra.mxu0 %v1156
        %1477 = vmatpush.bf16.msra.mxu0 %v1155
        %1478 = vmatpush.bf16.msra.mxu0 %v1154
        %1479 = vmatmul.bf16.gmra.mxu0 %v783
        %v1480 = vpop.f32.mrf.mxu0
        %v1481 = vadd.f32 %v1432, %v1480
        %v1482 = vpop.f32.mrf.mxu0
        %v1483 = vadd.f32 %v1434, %v1482
        %1484 = vmatmul.bf16.gmra.mxu0 %v790
        %v1485 = vpop.f32.mrf.mxu0
        %v1486 = vadd.f32 %v1437, %v1485
        %v1487 = vpop.f32.mrf.mxu0
        %v1488 = vadd.f32 %v1439, %v1487
        %1489 = vmatmul.bf16.gmra.mxu0 %v797
        %v1490 = vpop.f32.mrf.mxu0
        %v1491 = vadd.f32 %v1442, %v1490
        %v1492 = vpop.f32.mrf.mxu0
        %v1493 = vadd.f32 %v1444, %v1492
        %1494 = vmatmul.bf16.gmra.mxu0 %v804
        %v1495 = vpop.f32.mrf.mxu0
        %v1496 = vadd.f32 %v1447, %v1495
        %v1497 = vpop.f32.mrf.mxu0
        %v1498 = vadd.f32 %v1449, %v1497
        %1499 = vmatmul.bf16.gmra.mxu0 %v811
        %v1500 = vpop.f32.mrf.mxu0
        %v1501 = vadd.f32 %v1452, %v1500
        %v1502 = vpop.f32.mrf.mxu0
        %v1503 = vadd.f32 %v1454, %v1502
        %1504 = vmatmul.bf16.gmra.mxu0 %v818
        %v1505 = vpop.f32.mrf.mxu0
        %v1506 = vadd.f32 %v1457, %v1505
        %v1507 = vpop.f32.mrf.mxu0
        %v1508 = vadd.f32 %v1459, %v1507
        %1509 = vmatmul.bf16.gmra.mxu0 %v825
        %v1510 = vpop.f32.mrf.mxu0
        %v1511 = vadd.f32 %v1462, %v1510
        %v1512 = vpop.f32.mrf.mxu0
        %v1513 = vadd.f32 %v1464, %v1512
        %1514 = vmatmul.bf16.gmra.mxu0 %v832
        %v1515 = vpop.f32.mrf.mxu0
        %v1516 = vadd.f32 %v1467, %v1515
        %v1517 = vpop.f32.mrf.mxu0
        %v1518 = vadd.f32 %v1469, %v1517
        %1519 = vdwg.mxu0
        %1520 = vmatpush.bf16.msra.mxu0 %v1169
        %1521 = vmatpush.bf16.msra.mxu0 %v1168
        %1522 = vmatpush.bf16.msra.mxu0 %v1167
        %1523 = vmatpush.bf16.msra.mxu0 %v1166
        %1524 = vmatpush.bf16.msra.mxu0 %v1165
        %1525 = vmatpush.bf16.msra.mxu0 %v1164
        %1526 = vmatpush.bf16.msra.mxu0 %v1163
        %1527 = vmatpush.bf16.msra.mxu0 %v1162
        %1528 = vmatmul.bf16.gmra.mxu0 %v784
        %v1529 = vpop.f32.mrf.mxu0
        %v1530 = vadd.f32 %v1481, %v1529
        %v1531 = vpop.f32.mrf.mxu0
        %v1532 = vadd.f32 %v1483, %v1531
        %1533 = vmatmul.bf16.gmra.mxu0 %v791
        %v1534 = vpop.f32.mrf.mxu0
        %v1535 = vadd.f32 %v1486, %v1534
        %v1536 = vpop.f32.mrf.mxu0
        %v1537 = vadd.f32 %v1488, %v1536
        %1538 = vmatmul.bf16.gmra.mxu0 %v798
        %v1539 = vpop.f32.mrf.mxu0
        %v1540 = vadd.f32 %v1491, %v1539
        %v1541 = vpop.f32.mrf.mxu0
        %v1542 = vadd.f32 %v1493, %v1541
        %1543 = vmatmul.bf16.gmra.mxu0 %v805
        %v1544 = vpop.f32.mrf.mxu0
        %v1545 = vadd.f32 %v1496, %v1544
        %v1546 = vpop.f32.mrf.mxu0
        %v1547 = vadd.f32 %v1498, %v1546
        %1548 = vmatmul.bf16.gmra.mxu0 %v812
        %v1549 = vpop.f32.mrf.mxu0
        %v1550 = vadd.f32 %v1501, %v1549
        %v1551 = vpop.f32.mrf.mxu0
        %v1552 = vadd.f32 %v1503, %v1551
        %1553 = vmatmul.bf16.gmra.mxu0 %v819
        %v1554 = vpop.f32.mrf.mxu0
        %v1555 = vadd.f32 %v1506, %v1554
        %v1556 = vpop.f32.mrf.mxu0
        %v1557 = vadd.f32 %v1508, %v1556
        %1558 = vmatmul.bf16.gmra.mxu0 %v826
        %v1559 = vpop.f32.mrf.mxu0
        %v1560 = vadd.f32 %v1511, %v1559
        %v1561 = vpop.f32.mrf.mxu0
        %v1562 = vadd.f32 %v1513, %v1561
        %1563 = vmatmul.bf16.gmra.mxu0 %v833
        %v1564 = vpop.f32.mrf.mxu0
        %v1565 = vadd.f32 %v1516, %v1564
        %v1566 = vpop.f32.mrf.mxu0
        %v1567 = vadd.f32 %v1518, %v1566
        %1568 = vdwg.mxu0
        %v1569 = vmax.f32 %v1530, 0.0
        %v1570 = vmax.f32 %v1532, 0.0
        %v1571 = vmax.f32 %v1535, 0.0
        %v1572 = vmax.f32 %v1537, 0.0
        %v1573 = vmax.f32 %v1540, 0.0
        %v1574 = vmax.f32 %v1542, 0.0
        %v1575 = vmax.f32 %v1545, 0.0
        %v1576 = vmax.f32 %v1547, 0.0
        %v1577 = vmax.f32 %v1550, 0.0
        %v1578 = vmax.f32 %v1552, 0.0
        %v1579 = vmax.f32 %v1555, 0.0
        %v1580 = vmax.f32 %v1557, 0.0
        %v1581 = vmax.f32 %v1560, 0.0
        %v1582 = vmax.f32 %v1562, 0.0
        %v1583 = vmax.f32 %v1565, 0.0
        %v1584 = vmax.f32 %v1567, 0.0
        %v1585 = vpack.c.bf16 %v1570, %v1569
        %v1586 = vpack.c.bf16 %v1572, %v1571
        %v1587 = vpack.c.bf16 %v1574, %v1573
        %v1588 = vpack.c.bf16 %v1576, %v1575
        %v1589 = vpack.c.bf16 %v1578, %v1577
        %v1590 = vpack.c.bf16 %v1580, %v1579
        %v1591 = vpack.c.bf16 %v1582, %v1581
        %v1592 = vpack.c.bf16 %v1584, %v1583
        %v1593 = vld [vmem:[#allocation7] sm:$0xf]
        %v1594 = vld [vmem:[#allocation7 + $0x4] sm:$0xf]
        %v1595 = vld [vmem:[#allocation7 + $0x8] sm:$0xf]
        %v1596 = vld [vmem:[#allocation7 + $0xc] sm:$0xf]
        %v1597 = vld [vmem:[#allocation7 + $0x10] sm:$0xf]
        %v1598 = vld [vmem:[#allocation7 + $0x14] sm:$0xf]
        %v1599 = vld [vmem:[#allocation7 + $0x18] sm:$0xf]
        %v1600 = vld [vmem:[#allocation7 + $0x1c] sm:$0xf]
        %v1601 = vld [vmem:[#allocation7 + $0x20] sm:$0xf]
        %v1602 = vld [vmem:[#allocation7 + $0x24] sm:$0xf]
        %v1603 = vld [vmem:[#allocation7 + $0x28] sm:$0xf]
        %v1604 = vld [vmem:[#allocation7 + $0x2c] sm:$0xf]
        %v1605 = vld [vmem:[#allocation7 + $0x30] sm:$0xf]
        %v1606 = vld [vmem:[#allocation7 + $0x34] sm:$0xf]
        %v1607 = vld [vmem:[#allocation7 + $0x38] sm:$0xf]
        %v1608 = vld [vmem:[#allocation7 + $0x3c] sm:$0xf]
        %v1609 = vld [vmem:[%s4] sm:$0x1]
        %v1611 = vperm.slane %v1609, 0
        %v1629 = vunpack.c.l.b16 %v1593
        %v1630 = vunpack.c.l.b16 %v1594
        %v1631 = vunpack.c.l.b16 %v1595
        %v1632 = vunpack.c.l.b16 %v1596
        %v1633 = vunpack.c.l.b16 %v1597
        %v1634 = vunpack.c.l.b16 %v1598
        %v1635 = vunpack.c.l.b16 %v1599
        %v1636 = vunpack.c.l.b16 %v1600
        %v1637 = vunpack.c.l.b16 %v1601
        %v1638 = vunpack.c.l.b16 %v1602
        %v1639 = vunpack.c.l.b16 %v1603
        %v1640 = vunpack.c.l.b16 %v1604
        %v1641 = vunpack.c.l.b16 %v1605
        %v1642 = vunpack.c.l.b16 %v1606
        %v1643 = vunpack.c.l.b16 %v1607
        %v1644 = vunpack.c.l.b16 %v1608
        %v1645 = vpack.c.b16 %v1630, %v1629
        %v1646 = vpack.c.b16 %v1632, %v1631
        %v1647 = vpack.c.b16 %v1634, %v1633
        %v1648 = vpack.c.b16 %v1636, %v1635
        %v1649 = vpack.c.b16 %v1638, %v1637
        %v1650 = vpack.c.b16 %v1640, %v1639
        %v1651 = vpack.c.b16 %v1642, %v1641
        %v1652 = vpack.c.b16 %v1644, %v1643
        %1661 = vmatpush.bf16.msra.mxu0 %v1652
        %1662 = vmatpush.bf16.msra.mxu0 %v1651
        %1663 = vmatpush.bf16.msra.mxu0 %v1650
        %1664 = vmatpush.bf16.msra.mxu0 %v1649
        %1665 = vmatpush.bf16.msra.mxu0 %v1648
        %1666 = vmatpush.bf16.msra.mxu0 %v1647
        %1667 = vmatpush.bf16.msra.mxu0 %v1646
        %1668 = vmatpush.bf16.msra.mxu0 %v1645
        %1669 = vmatmul.bf16.gmra.mxu0 %v1585
        %v1670 = vpop.f32.mrf.mxu0
        %v1671 = vadd.f32 %v1611, %v1670
        %v1672 = vpop.f32.mrf.mxu0
        %v1673 = vadd.f32 %v1611, %v1672
        %1674 = vmatmul.bf16.gmra.mxu0 %v1586
        %v1675 = vpop.f32.mrf.mxu0
        %v1676 = vadd.f32 %v1611, %v1675
        %v1677 = vpop.f32.mrf.mxu0
        %v1678 = vadd.f32 %v1611, %v1677
        %1679 = vmatmul.bf16.gmra.mxu0 %v1587
        %v1680 = vpop.f32.mrf.mxu0
        %v1681 = vadd.f32 %v1611, %v1680
        %v1682 = vpop.f32.mrf.mxu0
        %v1683 = vadd.f32 %v1611, %v1682
        %1684 = vmatmul.bf16.gmra.mxu0 %v1588
        %v1685 = vpop.f32.mrf.mxu0
        %v1686 = vadd.f32 %v1611, %v1685
        %v1687 = vpop.f32.mrf.mxu0
        %v1688 = vadd.f32 %v1611, %v1687
        %1689 = vmatmul.bf16.gmra.mxu0 %v1589
        %v1690 = vpop.f32.mrf.mxu0
        %v1691 = vadd.f32 %v1611, %v1690
        %v1692 = vpop.f32.mrf.mxu0
        %v1693 = vadd.f32 %v1611, %v1692
        %1694 = vmatmul.bf16.gmra.mxu0 %v1590
        %v1695 = vpop.f32.mrf.mxu0
        %v1696 = vadd.f32 %v1611, %v1695
        %v1697 = vpop.f32.mrf.mxu0
        %v1698 = vadd.f32 %v1611, %v1697
        %1699 = vmatmul.bf16.gmra.mxu0 %v1591
        %v1700 = vpop.f32.mrf.mxu0
        %v1701 = vadd.f32 %v1611, %v1700
        %v1702 = vpop.f32.mrf.mxu0
        %v1703 = vadd.f32 %v1611, %v1702
        %1704 = vmatmul.bf16.gmra.mxu0 %v1592
        %v1705 = vpop.f32.mrf.mxu0
        %v1706 = vadd.f32 %v1611, %v1705
        %v1707 = vpop.f32.mrf.mxu0
        %v1708 = vadd.f32 %v1611, %v1707
        %1709 = vdwg.mxu0
        %v1710 = vmax.f32 %v1671, 0.0
        %v1711 = vmax.f32 %v1673, 0.0
        %v1712 = vmax.f32 %v1676, 0.0
        %v1713 = vmax.f32 %v1678, 0.0
        %v1714 = vmax.f32 %v1681, 0.0
        %v1715 = vmax.f32 %v1683, 0.0
        %v1716 = vmax.f32 %v1686, 0.0
        %v1717 = vmax.f32 %v1688, 0.0
        %v1718 = vmax.f32 %v1691, 0.0
        %v1719 = vmax.f32 %v1693, 0.0
        %v1720 = vmax.f32 %v1696, 0.0
        %v1721 = vmax.f32 %v1698, 0.0
        %v1722 = vmax.f32 %v1701, 0.0
        %v1723 = vmax.f32 %v1703, 0.0
        %v1724 = vmax.f32 %v1706, 0.0
        %v1725 = vmax.f32 %v1708, 0.0
        %v1726 = vpack.c.bf16 %v1711, %v1710
        %v1727 = vpack.c.bf16 %v1713, %v1712
        %v1728 = vpack.c.bf16 %v1715, %v1714
        %v1729 = vpack.c.bf16 %v1717, %v1716
        %v1730 = vpack.c.bf16 %v1719, %v1718
        %v1731 = vpack.c.bf16 %v1721, %v1720
        %v1732 = vpack.c.bf16 %v1723, %v1722
        %v1733 = vpack.c.bf16 %v1725, %v1724
        %v1734 = vld [vmem:[#allocation8] sm:$0xf]
        %v1735 = vld [vmem:[#allocation8 + $0x4] sm:$0xf]
        %v1736 = vld [vmem:[#allocation8 + $0x8] sm:$0xf]
        %v1737 = vld [vmem:[#allocation8 + $0xc] sm:$0xf]
        %v1738 = vld [vmem:[#allocation8 + $0x10] sm:$0xf]
        %v1739 = vld [vmem:[#allocation8 + $0x14] sm:$0xf]
        %v1740 = vld [vmem:[#allocation8 + $0x18] sm:$0xf]
        %v1741 = vld [vmem:[#allocation8 + $0x1c] sm:$0xf]
        %v1742 = vld [vmem:[#allocation8 + $0x20] sm:$0xf]
        %v1743 = vld [vmem:[#allocation8 + $0x24] sm:$0xf]
        %v1744 = vld [vmem:[#allocation8 + $0x28] sm:$0xf]
        %v1745 = vld [vmem:[#allocation8 + $0x2c] sm:$0xf]
        %v1746 = vld [vmem:[#allocation8 + $0x30] sm:$0xf]
        %v1747 = vld [vmem:[#allocation8 + $0x34] sm:$0xf]
        %v1748 = vld [vmem:[#allocation8 + $0x38] sm:$0xf]
        %v1749 = vld [vmem:[#allocation8 + $0x3c] sm:$0xf]
        %v1750 = vld [vmem:[%s6] sm:$0x1]
        %v1752 = vperm.slane %v1750, 0
        %v1770 = vunpack.c.l.b16 %v1734
        %v1771 = vunpack.c.l.b16 %v1735
        %v1772 = vunpack.c.l.b16 %v1736
        %v1773 = vunpack.c.l.b16 %v1737
        %v1774 = vunpack.c.l.b16 %v1738
        %v1775 = vunpack.c.l.b16 %v1739
        %v1776 = vunpack.c.l.b16 %v1740
        %v1777 = vunpack.c.l.b16 %v1741
        %v1778 = vunpack.c.l.b16 %v1742
        %v1779 = vunpack.c.l.b16 %v1743
        %v1780 = vunpack.c.l.b16 %v1744
        %v1781 = vunpack.c.l.b16 %v1745
        %v1782 = vunpack.c.l.b16 %v1746
        %v1783 = vunpack.c.l.b16 %v1747
        %v1784 = vunpack.c.l.b16 %v1748
        %v1785 = vunpack.c.l.b16 %v1749
        %v1786 = vpack.c.b16 %v1771, %v1770
        %v1787 = vpack.c.b16 %v1773, %v1772
        %v1788 = vpack.c.b16 %v1775, %v1774
        %v1789 = vpack.c.b16 %v1777, %v1776
        %v1790 = vpack.c.b16 %v1779, %v1778
        %v1791 = vpack.c.b16 %v1781, %v1780
        %v1792 = vpack.c.b16 %v1783, %v1782
        %v1793 = vpack.c.b16 %v1785, %v1784
        %1802 = vmatpush.bf16.msra.mxu0 %v1793
        %1803 = vmatpush.bf16.msra.mxu0 %v1792
        %1804 = vmatpush.bf16.msra.mxu0 %v1791
        %1805 = vmatpush.bf16.msra.mxu0 %v1790
        %1806 = vmatpush.bf16.msra.mxu0 %v1789
        %1807 = vmatpush.bf16.msra.mxu0 %v1788
        %1808 = vmatpush.bf16.msra.mxu0 %v1787
        %1809 = vmatpush.bf16.msra.mxu0 %v1786
        %1810 = vmatmul.bf16.gmra.mxu0 %v1726
        %v1811 = vpop.f32.mrf.mxu0
        %v1812 = vadd.f32 %v1752, %v1811
        %v1813 = vpop.f32.mrf.mxu0
        %v1814 = vadd.f32 %v1752, %v1813
        %1815 = vmatmul.bf16.gmra.mxu0 %v1727
        %v1816 = vpop.f32.mrf.mxu0
        %v1817 = vadd.f32 %v1752, %v1816
        %v1818 = vpop.f32.mrf.mxu0
        %v1819 = vadd.f32 %v1752, %v1818
        %1820 = vmatmul.bf16.gmra.mxu0 %v1728
        %v1821 = vpop.f32.mrf.mxu0
        %v1822 = vadd.f32 %v1752, %v1821
        %v1823 = vpop.f32.mrf.mxu0
        %v1824 = vadd.f32 %v1752, %v1823
        %1825 = vmatmul.bf16.gmra.mxu0 %v1729
        %v1826 = vpop.f32.mrf.mxu0
        %v1827 = vadd.f32 %v1752, %v1826
        %v1828 = vpop.f32.mrf.mxu0
        %v1829 = vadd.f32 %v1752, %v1828
        %1830 = vmatmul.bf16.gmra.mxu0 %v1730
        %v1831 = vpop.f32.mrf.mxu0
        %v1832 = vadd.f32 %v1752, %v1831
        %v1833 = vpop.f32.mrf.mxu0
        %v1834 = vadd.f32 %v1752, %v1833
        %1835 = vmatmul.bf16.gmra.mxu0 %v1731
        %v1836 = vpop.f32.mrf.mxu0
        %v1837 = vadd.f32 %v1752, %v1836
        %v1838 = vpop.f32.mrf.mxu0
        %v1839 = vadd.f32 %v1752, %v1838
        %1840 = vmatmul.bf16.gmra.mxu0 %v1732
        %v1841 = vpop.f32.mrf.mxu0
        %v1842 = vadd.f32 %v1752, %v1841
        %v1843 = vpop.f32.mrf.mxu0
        %v1844 = vadd.f32 %v1752, %v1843
        %1845 = vmatmul.bf16.gmra.mxu0 %v1733
        %v1846 = vpop.f32.mrf.mxu0
        %v1847 = vadd.f32 %v1752, %v1846
        %v1848 = vpop.f32.mrf.mxu0
        %v1849 = vadd.f32 %v1752, %v1848
        %1850 = vdwg.mxu0
        %v1851 = vmax.f32 %v1812, 0.0
        %v1852 = vmax.f32 %v1814, 0.0
        %v1853 = vmax.f32 %v1817, 0.0
        %v1854 = vmax.f32 %v1819, 0.0
        %v1855 = vmax.f32 %v1822, 0.0
        %v1856 = vmax.f32 %v1824, 0.0
        %v1857 = vmax.f32 %v1827, 0.0
        %v1858 = vmax.f32 %v1829, 0.0
        %v1859 = vmax.f32 %v1832, 0.0
        %v1860 = vmax.f32 %v1834, 0.0
        %v1861 = vmax.f32 %v1837, 0.0
        %v1862 = vmax.f32 %v1839, 0.0
        %v1863 = vmax.f32 %v1842, 0.0
        %v1864 = vmax.f32 %v1844, 0.0
        %v1865 = vmax.f32 %v1847, 0.0
        %v1866 = vmax.f32 %v1849, 0.0
        %v1867 = vpack.c.bf16 %v1852, %v1851
        %v1868 = vpack.c.bf16 %v1854, %v1853
        %v1869 = vpack.c.bf16 %v1856, %v1855
        %v1870 = vpack.c.bf16 %v1858, %v1857
        %v1871 = vpack.c.bf16 %v1860, %v1859
        %v1872 = vpack.c.bf16 %v1862, %v1861
        %v1873 = vpack.c.bf16 %v1864, %v1863
        %v1874 = vpack.c.bf16 %v1866, %v1865
        %v1875 = vld [vmem:[#allocation10] sm:$0xf]
        %v1876 = vld [vmem:[#allocation10 + $0x4] sm:$0xf]
        %v1877 = vld [vmem:[#allocation10 + $0x8] sm:$0xf]
        %v1878 = vld [vmem:[#allocation10 + $0xc] sm:$0xf]
        %v1879 = vld [vmem:[#allocation10 + $0x10] sm:$0xf]
        %v1880 = vld [vmem:[#allocation10 + $0x14] sm:$0xf]
        %v1881 = vld [vmem:[#allocation10 + $0x18] sm:$0xf]
        %v1882 = vld [vmem:[#allocation10 + $0x1c] sm:$0xf]
        %v1883 = vld [vmem:[#allocation10 + $0x20] sm:$0xf]
        %v1884 = vld [vmem:[#allocation10 + $0x24] sm:$0xf]
        %v1885 = vld [vmem:[#allocation10 + $0x28] sm:$0xf]
        %v1886 = vld [vmem:[#allocation10 + $0x2c] sm:$0xf]
        %v1887 = vld [vmem:[#allocation10 + $0x30] sm:$0xf]
        %v1888 = vld [vmem:[#allocation10 + $0x34] sm:$0xf]
        %v1889 = vld [vmem:[#allocation10 + $0x38] sm:$0xf]
        %v1890 = vld [vmem:[#allocation10 + $0x3c] sm:$0xf]
        %v1891 = vld [vmem:[%s8] sm:$0x1]
        %v1893 = vperm.slane %v1891, 0
        %v1911 = vunpack.c.l.b16 %v1875
        %v1912 = vunpack.c.l.b16 %v1876
        %v1913 = vunpack.c.l.b16 %v1877
        %v1914 = vunpack.c.l.b16 %v1878
        %v1915 = vunpack.c.l.b16 %v1879
        %v1916 = vunpack.c.l.b16 %v1880
        %v1917 = vunpack.c.l.b16 %v1881
        %v1918 = vunpack.c.l.b16 %v1882
        %v1919 = vunpack.c.l.b16 %v1883
        %v1920 = vunpack.c.l.b16 %v1884
        %v1921 = vunpack.c.l.b16 %v1885
        %v1922 = vunpack.c.l.b16 %v1886
        %v1923 = vunpack.c.l.b16 %v1887
        %v1924 = vunpack.c.l.b16 %v1888
        %v1925 = vunpack.c.l.b16 %v1889
        %v1926 = vunpack.c.l.b16 %v1890
        %v1927 = vpack.c.b16 %v1912, %v1911
        %v1928 = vpack.c.b16 %v1914, %v1913
        %v1929 = vpack.c.b16 %v1916, %v1915
        %v1930 = vpack.c.b16 %v1918, %v1917
        %v1931 = vpack.c.b16 %v1920, %v1919
        %v1932 = vpack.c.b16 %v1922, %v1921
        %v1933 = vpack.c.b16 %v1924, %v1923
        %v1934 = vpack.c.b16 %v1926, %v1925
        %1943 = vmatpush.bf16.msra.mxu0 %v1934
        %1944 = vmatpush.bf16.msra.mxu0 %v1933
        %1945 = vmatpush.bf16.msra.mxu0 %v1932
        %1946 = vmatpush.bf16.msra.mxu0 %v1931
        %1947 = vmatpush.bf16.msra.mxu0 %v1930
        %1948 = vmatpush.bf16.msra.mxu0 %v1929
        %1949 = vmatpush.bf16.msra.mxu0 %v1928
        %1950 = vmatpush.bf16.msra.mxu0 %v1927
        %1951 = vmatmul.bf16.gmra.mxu0 %v1867
        %v1952 = vpop.f32.mrf.mxu0
        %v1953 = vadd.f32 %v1893, %v1952
        %v1954 = vpop.f32.mrf.mxu0
        %v1955 = vadd.f32 %v1893, %v1954
        %1956 = vmatmul.bf16.gmra.mxu0 %v1868
        %v1957 = vpop.f32.mrf.mxu0
        %v1958 = vadd.f32 %v1893, %v1957
        %v1959 = vpop.f32.mrf.mxu0
        %v1960 = vadd.f32 %v1893, %v1959
        %1961 = vmatmul.bf16.gmra.mxu0 %v1869
        %v1962 = vpop.f32.mrf.mxu0
        %v1963 = vadd.f32 %v1893, %v1962
        %v1964 = vpop.f32.mrf.mxu0
        %v1965 = vadd.f32 %v1893, %v1964
        %1966 = vmatmul.bf16.gmra.mxu0 %v1870
        %v1967 = vpop.f32.mrf.mxu0
        %v1968 = vadd.f32 %v1893, %v1967
        %v1969 = vpop.f32.mrf.mxu0
        %v1970 = vadd.f32 %v1893, %v1969
        %1971 = vmatmul.bf16.gmra.mxu0 %v1871
        %v1972 = vpop.f32.mrf.mxu0
        %v1973 = vadd.f32 %v1893, %v1972
        %v1974 = vpop.f32.mrf.mxu0
        %v1975 = vadd.f32 %v1893, %v1974
        %1976 = vmatmul.bf16.gmra.mxu0 %v1872
        %v1977 = vpop.f32.mrf.mxu0
        %v1978 = vadd.f32 %v1893, %v1977
        %v1979 = vpop.f32.mrf.mxu0
        %v1980 = vadd.f32 %v1893, %v1979
        %1981 = vmatmul.bf16.gmra.mxu0 %v1873
        %v1982 = vpop.f32.mrf.mxu0
        %v1983 = vadd.f32 %v1893, %v1982
        %v1984 = vpop.f32.mrf.mxu0
        %v1985 = vadd.f32 %v1893, %v1984
        %1986 = vmatmul.bf16.gmra.mxu0 %v1874
        %v1987 = vpop.f32.mrf.mxu0
        %v1988 = vadd.f32 %v1893, %v1987
        %v1989 = vpop.f32.mrf.mxu0
        %v1990 = vadd.f32 %v1893, %v1989
        %1991 = vdwg.mxu0
        %1992 = vmax.xlane.f32.xlu0 %v1953
        %v1993 = vpop.xlane.xlu0 %1992
        %1994 = vmax.xlane.f32.xlu0 %v1955
        %v1995 = vpop.xlane.xlu0 %1994
        %1996 = vmax.xlane.f32.xlu0 %v1958
        %v1997 = vpop.xlane.xlu0 %1996
        %1998 = vmax.xlane.f32.xlu0 %v1960
        %v1999 = vpop.xlane.xlu0 %1998
        %2000 = vmax.xlane.f32.xlu0 %v1963
        %v2001 = vpop.xlane.xlu0 %2000
        %2002 = vmax.xlane.f32.xlu0 %v1965
        %v2003 = vpop.xlane.xlu0 %2002
        %2004 = vmax.xlane.f32.xlu0 %v1968
        %v2005 = vpop.xlane.xlu0 %2004
        %2006 = vmax.xlane.f32.xlu0 %v1970
        %v2007 = vpop.xlane.xlu0 %2006
        %2008 = vmax.xlane.f32.xlu0 %v1973
        %v2009 = vpop.xlane.xlu0 %2008
        %2010 = vmax.xlane.f32.xlu0 %v1975
        %v2011 = vpop.xlane.xlu0 %2010
        %2012 = vmax.xlane.f32.xlu0 %v1978
        %v2013 = vpop.xlane.xlu0 %2012
        %2014 = vmax.xlane.f32.xlu0 %v1980
        %v2015 = vpop.xlane.xlu0 %2014
        %2016 = vmax.xlane.f32.xlu0 %v1983
        %v2017 = vpop.xlane.xlu0 %2016
        %2018 = vmax.xlane.f32.xlu0 %v1985
        %v2019 = vpop.xlane.xlu0 %2018
        %2020 = vmax.xlane.f32.xlu0 %v1988
        %v2021 = vpop.xlane.xlu0 %2020
        %2022 = vmax.xlane.f32.xlu0 %v1990
        %v2023 = vpop.xlane.xlu0 %2022
        %v2024 = vsub.f32 %v1953, %v1993
        %v2025 = vsub.f32 %v1955, %v1995
        %v2026 = vsub.f32 %v1958, %v1997
        %v2027 = vsub.f32 %v1960, %v1999
        %v2028 = vsub.f32 %v1963, %v2001
        %v2029 = vsub.f32 %v1965, %v2003
        %v2030 = vsub.f32 %v1968, %v2005
        %v2031 = vsub.f32 %v1970, %v2007
        %v2032 = vsub.f32 %v1973, %v2009
        %v2033 = vsub.f32 %v1975, %v2011
        %v2034 = vsub.f32 %v1978, %v2013
        %v2035 = vsub.f32 %v1980, %v2015
        %v2036 = vsub.f32 %v1983, %v2017
        %v2037 = vsub.f32 %v1985, %v2019
        %v2038 = vsub.f32 %v1988, %v2021
        %v2039 = vsub.f32 %v1990, %v2023
        %v2040 = vmul.f32 %v2024, 1.442695
        %v2041 = vpow.pop %v2040
        %v2042 = vmul.f32 %v2025, 1.442695
        %v2043 = vpow.pop %v2042
        %v2044 = vmul.f32 %v2026, 1.442695
        %v2045 = vpow.pop %v2044
        %v2046 = vmul.f32 %v2027, 1.442695
        %v2047 = vpow.pop %v2046
        %v2048 = vmul.f32 %v2028, 1.442695
        %v2049 = vpow.pop %v2048
        %v2050 = vmul.f32 %v2029, 1.442695
        %v2051 = vpow.pop %v2050
        %v2052 = vmul.f32 %v2030, 1.442695
        %v2053 = vpow.pop %v2052
        %v2054 = vmul.f32 %v2031, 1.442695
        %v2055 = vpow.pop %v2054
        %v2056 = vmul.f32 %v2032, 1.442695
        %v2057 = vpow.pop %v2056
        %v2058 = vmul.f32 %v2033, 1.442695
        %v2059 = vpow.pop %v2058
        %v2060 = vmul.f32 %v2034, 1.442695
        %v2061 = vpow.pop %v2060
        %v2062 = vmul.f32 %v2035, 1.442695
        %v2063 = vpow.pop %v2062
        %v2064 = vmul.f32 %v2036, 1.442695
        %v2065 = vpow.pop %v2064
        %v2066 = vmul.f32 %v2037, 1.442695
        %v2067 = vpow.pop %v2066
        %v2068 = vmul.f32 %v2038, 1.442695
        %v2069 = vpow.pop %v2068
        %v2070 = vmul.f32 %v2039, 1.442695
        %v2071 = vpow.pop %v2070
        %2072 = vadd.xlane.f32.xlu0 %v2041
        %v2073 = vpop.xlane.xlu0 %2072
        %2074 = vadd.xlane.f32.xlu0 %v2043
        %v2075 = vpop.xlane.xlu0 %2074
        %2076 = vadd.xlane.f32.xlu0 %v2045
        %v2077 = vpop.xlane.xlu0 %2076
        %2078 = vadd.xlane.f32.xlu0 %v2047
        %v2079 = vpop.xlane.xlu0 %2078
        %2080 = vadd.xlane.f32.xlu0 %v2049
        %v2081 = vpop.xlane.xlu0 %2080
        %2082 = vadd.xlane.f32.xlu0 %v2051
        %v2083 = vpop.xlane.xlu0 %2082
        %2084 = vadd.xlane.f32.xlu0 %v2053
        %v2085 = vpop.xlane.xlu0 %2084
        %2086 = vadd.xlane.f32.xlu0 %v2055
        %v2087 = vpop.xlane.xlu0 %2086
        %2088 = vadd.xlane.f32.xlu0 %v2057
        %v2089 = vpop.xlane.xlu0 %2088
        %2090 = vadd.xlane.f32.xlu0 %v2059
        %v2091 = vpop.xlane.xlu0 %2090
        %2092 = vadd.xlane.f32.xlu0 %v2061
        %v2093 = vpop.xlane.xlu0 %2092
        %2094 = vadd.xlane.f32.xlu0 %v2063
        %v2095 = vpop.xlane.xlu0 %2094
        %2096 = vadd.xlane.f32.xlu0 %v2065
        %v2097 = vpop.xlane.xlu0 %2096
        %2098 = vadd.xlane.f32.xlu0 %v2067
        %v2099 = vpop.xlane.xlu0 %2098
        %2100 = vadd.xlane.f32.xlu0 %v2069
        %v2101 = vpop.xlane.xlu0 %2100
        %2102 = vadd.xlane.f32.xlu0 %v2071
        %v2103 = vpop.xlane.xlu0 %2102
        %v2104 = vlog2.pop %v2073
        %v2105 = vmul.f32 %v2104, 0.6931472
        %v2106 = vlog2.pop %v2075
        %v2107 = vmul.f32 %v2106, 0.6931472
        %v2108 = vlog2.pop %v2077
        %v2109 = vmul.f32 %v2108, 0.6931472
        %v2110 = vlog2.pop %v2079
        %v2111 = vmul.f32 %v2110, 0.6931472
        %v2112 = vlog2.pop %v2081
        %v2113 = vmul.f32 %v2112, 0.6931472
        %v2114 = vlog2.pop %v2083
        %v2115 = vmul.f32 %v2114, 0.6931472
        %v2116 = vlog2.pop %v2085
        %v2117 = vmul.f32 %v2116, 0.6931472
        %v2118 = vlog2.pop %v2087
        %v2119 = vmul.f32 %v2118, 0.6931472
        %v2120 = vlog2.pop %v2089
        %v2121 = vmul.f32 %v2120, 0.6931472
        %v2122 = vlog2.pop %v2091
        %v2123 = vmul.f32 %v2122, 0.6931472
        %v2124 = vlog2.pop %v2093
        %v2125 = vmul.f32 %v2124, 0.6931472
        %v2126 = vlog2.pop %v2095
        %v2127 = vmul.f32 %v2126, 0.6931472
        %v2128 = vlog2.pop %v2097
        %v2129 = vmul.f32 %v2128, 0.6931472
        %v2130 = vlog2.pop %v2099
        %v2131 = vmul.f32 %v2130, 0.6931472
        %v2132 = vlog2.pop %v2101
        %v2133 = vmul.f32 %v2132, 0.6931472
        %v2134 = vlog2.pop %v2103
        %v2135 = vmul.f32 %v2134, 0.6931472
        %v2136 = vsub.f32 %v2024, %v2105
        %v2137 = vsub.f32 %v2025, %v2107
        %v2138 = vsub.f32 %v2026, %v2109
        %v2139 = vsub.f32 %v2027, %v2111
        %v2140 = vsub.f32 %v2028, %v2113
        %v2141 = vsub.f32 %v2029, %v2115
        %v2142 = vsub.f32 %v2030, %v2117
        %v2143 = vsub.f32 %v2031, %v2119
        %v2144 = vsub.f32 %v2032, %v2121
        %v2145 = vsub.f32 %v2033, %v2123
        %v2146 = vsub.f32 %v2034, %v2125
        %v2147 = vsub.f32 %v2035, %v2127
        %v2148 = vsub.f32 %v2036, %v2129
        %v2149 = vsub.f32 %v2037, %v2131
        %v2150 = vsub.f32 %v2038, %v2133
        %v2151 = vsub.f32 %v2039, %v2135
        %2152 = vst [vmem:[%s419] sm:$0xff] %v2136
        %2153 = vst [vmem:[%s419 + $0x8] sm:$0xff] %v2137
        %2154 = vst [vmem:[%s419 + $0x10] sm:$0xff] %v2138
        %2155 = vst [vmem:[%s419 + $0x18] sm:$0xff] %v2139
        %2156 = vst [vmem:[%s419 + $0x20] sm:$0xff] %v2140
        %2157 = vst [vmem:[%s419 + $0x28] sm:$0xff] %v2141
        %2158 = vst [vmem:[%s419 + $0x30] sm:$0xff] %v2142
        %2159 = vst [vmem:[%s419 + $0x38] sm:$0xff] %v2143
        %2160 = vst [vmem:[%s419 + $0x40] sm:$0xff] %v2144
        %2161 = vst [vmem:[%s419 + $0x48] sm:$0xff] %v2145
        %2162 = vst [vmem:[%s419 + $0x50] sm:$0xff] %v2146
        %2163 = vst [vmem:[%s419 + $0x58] sm:$0xff] %v2147
        %2164 = vst [vmem:[%s419 + $0x60] sm:$0xff] %v2148
        %2165 = vst [vmem:[%s419 + $0x68] sm:$0xff] %v2149
        %2166 = vst [vmem:[%s419 + $0x70] sm:$0xff] %v2150
        %2167 = vst [vmem:[%s419 + $0x78] sm:$0xff] %v2151
        %s2168 = sand.u32 %s230, 1
        %s2169 = scalar_lea.sflag [#allocation4], %s2168
        %s2170 = sand.u32 %s230, 1
        %s2171 = smul.addr %s2170, 128
        %s2172 = scalar_lea.vmem [#allocation11], %s2171
        // Predicated region
        $region77: #{tpu_custom_call.1} parent=55 // pred_check
          %p2173 = pneg %p240
        $region78: #{tpu_custom_call.1} parent=55 // pred_check_branch
          %2175 = sbr.rel (%p2173) target = $region80
        $region79: #{tpu_custom_call.1} parent=55 // pred_region
          %s2176 = smul.u32 16, %s28
          %2178 = vsyncadd %s2169, 0
          %s2179 = smul.addr %s2176, 8
          %s2180 = scalar_lea.hbm %s9, %s2179
          %s2181 = sshll.u32 %s2172, 4
          %s2182 = int_to_ptr.vmem [resolvable:$true] %s2181
          %s2183 = sshll.u32 %s2180, 4
          %s2184 = int_to_ptr.hbm [resolvable:$true] %s2183
          %2189 = dma.vmem_to_hbm [thread:$0]  %s2182, 2048, %s2184, %s2169, 128, 128, 8
        $region80: #{tpu_custom_call.1} parent=55 // pred_fallthru
          _
      $region56: #{tpu_custom_call.1} parent=5 // pred_fallthru
        _
      %p2190 = scmp.le.s32.totalorder 2, %s23
      // Predicated region
      $region81: #{tpu_custom_call.1} parent=5 // pred_check
        %p2191 = pneg %p2190
      $region82: #{tpu_custom_call.1} parent=5 // pred_check_branch
        %2193 = sbr.rel (%p2191) target = $region84
      $region83: #{tpu_custom_call.1} parent=5 // pred_region
        %s2194 = ssub.s32 %s23, 2
        // Predicated region
        $region85: #{tpu_custom_call.1} parent=83 // pred_check
          %p2195 = pneg %p246
        $region86: #{tpu_custom_call.1} parent=83 // pred_check_branch
          %2197 = sbr.rel (%p2195) target = $region88
        $region87: #{tpu_custom_call.1} parent=83 // pred_region
          %s2198 = sand.u32 %s231, 1
          %s2199 = scalar_lea.sflag [#allocation4], %s2198
          %s2200 = sand.u32 %s231, 1
          %s2201 = smul.addr %s2200, 128
          %s2202 = scalar_lea.vmem [#allocation11], %s2201
          %2204 = dma.done %s2199, 2048
        $region88: #{tpu_custom_call.1} parent=83 // pred_fallthru
          _
      $region84: #{tpu_custom_call.1} parent=5 // pred_fallthru
        _
    $region6: #{tpu_custom_call.1} parent=1 // loop_footer
      %s27 = sadd.s32 1, %s23
    $region7: #{tpu_custom_call.1} parent=1 // loop_footer_branch
      %22 = sbr.rel target = $region3
    $region8: #{tpu_custom_call.1} parent=1 // loop_exit
      _
    %2205 = vsyncpa [#allocation3], 1
    %s2206 = scalar_lea.sflag [#allocation3], 1
    %2207 = vsyncpa %s2206, 1
    %2208 = vsyncpa [#allocation6], 1
    %2209 = vsyncpa [#allocation9], 1
    %2210 = vsyncpa [#allocation4], 1
    %s2211 = scalar_lea.sflag [#allocation4], 1
    %2212 = vsyncpa %s2211, 1

</llo_original>
